<compile_context>
chip_gen: v7x
topology: tpu7x:2x2x1
jax: 0.10.0
libtpu: 0.0.40
codegen_flags: <defaults>
</compile_context>

<pallas_src>
import functools

import jax
import jax.numpy as jnp
from jax import lax
from jax.experimental import pallas as pl
from jax.experimental.pallas import tpu as pltpu

_LN_EPS = 1e-5


def _round_up(x, m):
    return ((x + m - 1) // m) * m


def _ln_relu(t, gamma, beta, inv_h, mask):
    """relu(LayerNorm(t)) over the first H lane columns, f32.

    `mask` is None when H is already lane-dense (H % 128 == 0) -- no masking
    work is emitted in that case.
    """
    if mask is None:
        mean = jnp.sum(t, axis=-1, keepdims=True) * inv_h
        diff = t - mean
    else:
        mean = jnp.sum(t * mask, axis=-1, keepdims=True) * inv_h
        diff = (t - mean) * mask
    var = jnp.sum(diff * diff, axis=-1, keepdims=True) * inv_h
    y = diff * lax.rsqrt(var + _LN_EPS) * gamma + beta
    return jnp.maximum(y, 0.0)


def _fused_kernel(h_real,
                  e_ref, x_ref, src_ref, dst_ref, dst_row_ref,
                  ewu_ref, ebu_ref, wcat_ref, bcat_ref,
                  ln_eg_ref, ln_eb_ref, ln_ng_ref, ln_nb_ref,
                  e_new_ref, x_new_ref,
                  vxe_sc, vxn_sc, acc_sc):
    i = pl.program_id(0)
    te, hp = e_ref.shape
    vp = x_ref.shape[0]
    inv_h = 1.0 / float(h_real)
    if h_real == hp:
        mask = None                                   # static: skip LN masking
    else:
        col = lax.broadcasted_iota(jnp.int32, (1, hp), 1)
        mask = (col < h_real).astype(jnp.float32)

    # --- once, on the first edge tile: ALL node projections as one wide matmul
    #     Wcat = [Vs_edge | Vs_node | Us_node], result sliced into the scratches.
    @pl.when(i == 0)
    def _():
        xb = x_ref[...].astype(jnp.bfloat16)
        proj = jnp.dot(xb, wcat_ref[...],
                       preferred_element_type=jnp.float32) + bcat_ref[...]
        vxe_sc[...] = proj[:, :hp].astype(jnp.bfloat16)          # edge Vs(x)
        vxn_sc[...] = proj[:, hp:2 * hp].astype(jnp.bfloat16)    # node Vs(x)
        acc_sc[...] = proj[:, 2 * hp:]                           # f32 acc = Us(x)

    # --- one-hot tiles built in-register from the streamed indices -----------
    # (padded edges carry id = -1 -> all-zero rows/columns -> no contribution)
    src = src_ref[...]                       # (TE, 1) int32
    dst = dst_ref[...]                       # (TE, 1) int32
    dst_r = dst_row_ref[...]                 # (1, TE) int32
    lane_v = lax.broadcasted_iota(jnp.int32, (te, vp), 1)
    s = (lane_v == src).astype(jnp.float32).astype(jnp.bfloat16)   # (TE, Vp)
    d = (lane_v == dst).astype(jnp.float32).astype(jnp.bfloat16)   # (TE, Vp)
    sub_v = lax.broadcasted_iota(jnp.int32, (vp, te), 0)
    d_t = (sub_v == dst_r).astype(jnp.float32).astype(jnp.bfloat16)  # (Vp, TE) = D^T

    e_f32 = e_ref[...]
    eb = e_f32.astype(jnp.bfloat16)

    # e_tmp = Us(e) + Vs(x)[src] + Vs(x)[dst]  ==  Us(e) + (S + D) @ Vs(x)
    ue = jnp.dot(eb, ewu_ref[...], preferred_element_type=jnp.float32) + ebu_ref[...]
    gather = jnp.dot(s + d, vxe_sc[...], preferred_element_type=jnp.float32)
    e_tmp = ue + gather                      # f32, never leaves VMEM
    gate = jax.nn.sigmoid(e_tmp)

    # node aggregation contribution of this edge tile: acc += D^T @ (gate * Vs(x)[src])
    # D^T was generated directly, so this is a plain MXU matmul (no XLU transpose).
    neigh = jnp.dot(s, vxn_sc[...], preferred_element_type=jnp.float32)
    gated = (gate * neigh).astype(jnp.bfloat16)
    acc_sc[...] += jnp.dot(d_t, gated, preferred_element_type=jnp.float32)

    # fused edge epilogue: e_new = e + relu(LN(e_tmp))
    e_new_ref[...] = (e_f32 + _ln_relu(e_tmp, ln_eg_ref[...], ln_eb_ref[...],
                                       inv_h, mask)).astype(e_new_ref.dtype)

    # fused node epilogue on the last edge tile: x_new = x + relu(LN(Us(x) + agg))
    @pl.when(i == pl.num_programs(0) - 1)
    def _():
        x_new_ref[...] = (x_ref[...] + _ln_relu(acc_sc[...], ln_ng_ref[...],
                                                ln_nb_ref[...], inv_h, mask)
                          ).astype(x_new_ref.dtype)


def _vmem_limit_bytes():
    """Generation-aware scoped-VMEM limit: ~82% of physical capacity."""
    try:
        cap = int(pltpu.get_tpu_info().vmem_capacity_bytes)
    except Exception:
        cap = 64 * 1024 * 1024           # conservative fallback (v7x per-TC size)
    return max(32 * 1024 * 1024, min(int(cap * 0.82), 112 * 1024 * 1024))


def _pick_edge_tile(e_cnt, vp, hp, vmem_limit):
    """Largest edge-tile (multiple of 128) whose working set fits the budget."""
    # V-resident working set (constant-index inputs are single-buffered via
    # pl.Buffered(1); x_new output keeps the default double buffer; scratches).
    resident = (vp * hp * 4                       # x input (1 buffer)
                + 2 * vp * hp * 4                 # x_new output (2 buffers)
                + vp * hp * (2 + 2 + 4)           # vxe/vxn (bf16) + acc (f32)
                + 2 * (hp * hp + 3 * hp * hp)     # edge-Us weight + fused Wcat (bf16)
                + 512 * 1024)                     # biases/LN/semaphores/slack
    # Streamed per-edge-row bytes, double-buffered: e + e_new (f32), the two
    # (TE,1) int32 id columns (each pads to one lane-tile row = 512 B) and the
    # (1,TE) id row (4 B).
    stream_row = 2 * (4 * hp + 4 * hp + 512 + 512 + 4)
    # In-kernel temporaries: S, D, S+D, D^T (bf16) + f32 Hp-wide intermediates.
    temp_row = 8 * vp + 40 * hp
    budget = vmem_limit - resident
    te = 2048
    while te > 128 and te * (stream_row + temp_row) > budget:
        te //= 2
    te = max(te, 128)
    # TODO(synk): for very large V (residents/temporaries dominate), switch to a
    # scalar-prefetched index gather + dst-sorted segment scatter instead of the
    # in-kernel one-hot matmuls.
    return min(te, _round_up(max(e_cnt, 1), 128))


@jax.jit
def residual_gated_gcn_layer(x, e, edge_index, params):
    """Forward pass of ResidualGatedGCNLayer (aggregation='sum').

    x: (V, H) f32, e: (E, H) f32, edge_index: (2, E) int.
    Returns (x_new, e_new) with the same shapes as (x, e).
    """
    V, H = x.shape
    E = e.shape[0]
    Hp = _round_up(H, 128)                    # lane-dense feature dim
    Vp = _round_up(V, 128)                    # lane-dense one-hot / MXU K dim

    vmem_limit = _vmem_limit_bytes()
    TE = _pick_edge_tile(E, Vp, Hp, vmem_limit)
    Ep = _round_up(max(E, 1), TE)
    n_tiles = Ep // TE

    f32 = jnp.float32
    x_p = jnp.pad(x.astype(f32), ((0, Vp - V), (0, Hp - H)))
    e_p = jnp.pad(e.astype(f32), ((0, Ep - E), (0, Hp - H)))

    # Pad edge index with -1 -> all-zero one-hot rows/cols (no contribution).
    src = jnp.pad(edge_index[0].astype(jnp.int32), (0, Ep - E), constant_values=-1)
    dst = jnp.pad(edge_index[1].astype(jnp.int32), (0, Ep - E), constant_values=-1)
    src_col = src.reshape(Ep, 1)              # sublane layout -> build S (TE, Vp)
    dst_col = dst.reshape(Ep, 1)              # sublane layout -> build D (TE, Vp)
    dst_row = dst.reshape(1, Ep)              # lane layout    -> build D^T (Vp, TE)

    def prep_w(w):   # nn.Linear weight (H,H) -> pre-transposed, zero-padded, bf16
        return jnp.pad(w.T.astype(f32), ((0, Hp - H), (0, Hp - H))).astype(jnp.bfloat16)

    def prep_v(v):   # bias / gamma / beta -> (1, Hp) f32, zero-padded
        return jnp.pad(v.astype(f32).reshape(1, -1), ((0, 0), (0, Hp - H)))

    # Fused node-side projection weights: one (Hp, 3*Hp) matmul on tile 0.
    w_cat = jnp.concatenate([prep_w(params["edge_Vs_w"]),
                             prep_w(params["node_Vs_w"]),
                             prep_w(params["node_Us_w"])], axis=1)
    b_cat = jnp.concatenate([prep_v(params["edge_Vs_b"]),
                             prep_v(params["node_Vs_b"]),
                             prep_v(params["node_Us_b"])], axis=1)

    ops = (
        e_p, x_p, src_col, dst_col, dst_row,
        prep_w(params["edge_Us_w"]), prep_v(params["edge_Us_b"]),
        w_cat, b_cat,
        prep_v(params["ln_edge_g"]), prep_v(params["ln_edge_b"]),
        prep_v(params["ln_node_g"]), prep_v(params["ln_node_b"]),
    )

    def const_spec(shape):
        # Constant-index resident block: the block index never changes, so the
        # default 2-deep pipeline would only double its VMEM footprint.
        return pl.BlockSpec(shape, lambda i: (0, 0), pipeline_mode=pl.Buffered(1))

    in_specs = [
        pl.BlockSpec((TE, Hp), lambda i: (i, 0)),     # e           (streamed)
        const_spec((Vp, Hp)),                         # x           (resident)
        pl.BlockSpec((TE, 1), lambda i: (i, 0)),      # src ids, column layout
        pl.BlockSpec((TE, 1), lambda i: (i, 0)),      # dst ids, column layout
        pl.BlockSpec((1, TE), lambda i: (0, i)),      # dst ids, row layout (D^T)
        const_spec((Hp, Hp)), const_spec((1, Hp)),    # edge Us weight / bias
        const_spec((Hp, 3 * Hp)), const_spec((1, 3 * Hp)),   # fused Wcat / bcat
        const_spec((1, Hp)), const_spec((1, Hp)),     # LN edge gamma / beta
        const_spec((1, Hp)), const_spec((1, Hp)),     # LN node gamma / beta
    ]
    out_specs = (
        pl.BlockSpec((TE, Hp), lambda i: (i, 0)),     # e_new (per edge tile)
        # x_new is resident across the edge axis (constant index).
        # TODO(synk): could also be single-buffered (pl.Buffered(1)) to shave
        # another Vp*Hp*4 bytes of resident VMEM.
        pl.BlockSpec((Vp, Hp), lambda i: (0, 0)),
    )

    flops = 2 * Hp * Ep * (Hp + 3 * Vp) + 2 * Vp * Hp * 3 * Hp
    bytes_accessed = (4 * (2 * Ep * Hp + 2 * Vp * Hp + 8 * Hp)
                      + 12 * Ep + 2 * 4 * Hp * Hp)
    cost = pl.CostEstimate(flops=flops, transcendentals=Ep * Hp,
                           bytes_accessed=bytes_accessed)

    e_new_p, x_new_p = pl.pallas_call(
        functools.partial(_fused_kernel, H),
        out_shape=(jax.ShapeDtypeStruct((Ep, Hp), f32),
                   jax.ShapeDtypeStruct((Vp, Hp), f32)),
        grid_spec=pltpu.PrefetchScalarGridSpec(
            num_scalar_prefetch=0,
            grid=(n_tiles,),
            in_specs=in_specs,
            out_specs=out_specs,
            scratch_shapes=[
                pltpu.VMEM((Vp, Hp), jnp.bfloat16),   # edge Vs(x)
                pltpu.VMEM((Vp, Hp), jnp.bfloat16),   # node Vs(x)
                pltpu.VMEM((Vp, Hp), jnp.float32),    # node accumulator
            ]),
        compiler_params=pltpu.CompilerParams(
            # MUST stay "arbitrary": acc_sc is carried across edge tiles.
            # TODO(synk): on v7x (2 TCs) split the edge axis across cores with
            # per-core partial accumulators + a small combine pass.
            dimension_semantics=("arbitrary",),
            vmem_limit_bytes=vmem_limit),
        cost_estimate=cost,
    )(*ops)

    return x_new_p[:V, :H], e_new_p[:E, :H]


def init_params(key, hidden_dim):
    ks = jax.random.split(key, 8)
    scale = 1.0 / jnp.sqrt(hidden_dim)

    def lin(kw, kb):
        w = jax.random.uniform(kw, (hidden_dim, hidden_dim), jnp.float32, -scale, scale)
        b = jax.random.uniform(kb, (1, hidden_dim), jnp.float32, -scale, scale)
        return w, b

    ew_u, eb_u = lin(ks[0], ks[1])
    ew_v, eb_v = lin(ks[2], ks[3])
    nw_u, nb_u = lin(ks[4], ks[5])
    nw_v, nb_v = lin(ks[6], ks[7])
    return {
        "edge_Us_w": ew_u, "edge_Us_b": eb_u,
        "edge_Vs_w": ew_v, "edge_Vs_b": eb_v,
        "node_Us_w": nw_u, "node_Us_b": nb_u,
        "node_Vs_w": nw_v, "node_Vs_b": nb_v,
        "ln_edge_g": jnp.ones((1, hidden_dim), jnp.float32),
        "ln_edge_b": jnp.zeros((1, hidden_dim), jnp.float32),
        "ln_node_g": jnp.ones((1, hidden_dim), jnp.float32),
        "ln_node_b": jnp.zeros((1, hidden_dim), jnp.float32),
    }


def _reference(x, e, edge_index, params):
    """Pure-JAX f32 reference of the PyTorch forward (sum aggregation)."""
    src, dst = edge_index[0], edge_index[1]

    def lin(v, w, b):
        return v @ w.T + b

    Ue = lin(e, params["edge_Us_w"], params["edge_Us_b"])
    Vxe = lin(x, params["edge_Vs_w"], params["edge_Vs_b"])
    e_tmp = Ue + Vxe[src] + Vxe[dst]
    gate = jax.nn.sigmoid(e_tmp)
    Ux = lin(x, params["node_Us_w"], params["node_Us_b"])
    Vxn = lin(x, params["node_Vs_w"], params["node_Vs_b"])
    agg = jnp.zeros_like(x).at[dst].add(gate * Vxn[src])
    x_tmp = Ux + agg

    def ln(t, g, b):
        mean = t.mean(-1, keepdims=True)
        var = ((t - mean) ** 2).mean(-1, keepdims=True)
        return (t - mean) * lax.rsqrt(var + _LN_EPS) * g + b

    e_new = e + jax.nn.relu(ln(e_tmp, params["ln_edge_g"], params["ln_edge_b"]))
    x_new = x + jax.nn.relu(ln(x_tmp, params["ln_node_g"], params["ln_node_b"]))
    return x_new, e_new


if __name__ == "__main__":
    V, E, H = 8, 16, 32
    key = jax.random.PRNGKey(0)
    kx, ke, ksrc, kdst, kp = jax.random.split(key, 5)

    x = jax.random.normal(kx, (V, H), jnp.float32)
    e = jax.random.normal(ke, (E, H), jnp.float32)
    src = jax.random.randint(ksrc, (E,), 0, V, jnp.int32)
    dst = jax.random.randint(kdst, (E,), 0, V, jnp.int32)
    edge_index = jnp.stack([src, dst], axis=0)

    params = init_params(kp, H)

    x_new, e_new = residual_gated_gcn_layer(x, e, edge_index, params)
    jax.block_until_ready((x_new, e_new))

    assert x_new.shape == (V, H) and e_new.shape == (E, H)
    assert jnp.all(jnp.isfinite(x_new)) and jnp.all(jnp.isfinite(e_new))

    # bf16 MXU inputs with f32 accumulation -> loose tolerance vs f32 reference
    x_ref, e_ref = _reference(x, e, edge_index, params)
    assert jnp.allclose(x_new, x_ref, rtol=5e-2, atol=8e-2), \
        float(jnp.max(jnp.abs(x_new - x_ref)))
    assert jnp.allclose(e_new, e_ref, rtol=5e-2, atol=8e-2), \
        float(jnp.max(jnp.abs(e_new - e_ref)))

    print("KERNEL_OK")
</pallas_src>

<mosaic_0001>
module attributes {stable_mosaic.version = 11 : i64} {
  func.func @_fused_kernel(%arg0: i32, %arg1: memref<128x128xf32, #tpu.memory_space<vmem>>, %arg2: memref<128x128xf32, #tpu.memory_space<vmem>>, %arg3: memref<128x1xi32, #tpu.memory_space<vmem>>, %arg4: memref<128x1xi32, #tpu.memory_space<vmem>>, %arg5: memref<1x128xi32, #tpu.memory_space<vmem>>, %arg6: memref<128x128xbf16, #tpu.memory_space<vmem>>, %arg7: memref<1x128xf32, #tpu.memory_space<vmem>>, %arg8: memref<128x384xbf16, #tpu.memory_space<vmem>>, %arg9: memref<1x384xf32, #tpu.memory_space<vmem>>, %arg10: memref<1x128xf32, #tpu.memory_space<vmem>>, %arg11: memref<1x128xf32, #tpu.memory_space<vmem>>, %arg12: memref<1x128xf32, #tpu.memory_space<vmem>>, %arg13: memref<1x128xf32, #tpu.memory_space<vmem>>, %arg14: memref<128x128xf32, #tpu.memory_space<vmem>>, %arg15: memref<128x128xf32, #tpu.memory_space<vmem>>, %arg16: memref<128x128xbf16, #tpu.memory_space<vmem>>, %arg17: memref<128x128xbf16, #tpu.memory_space<vmem>>, %arg18: memref<128x128xf32, #tpu.memory_space<vmem>>) attributes {dimension_semantics = [#tpu.dimension_semantics<arbitrary>], iteration_bounds = array<i64: 1>, scalar_prefetch = 0 : i64, scratch_operands = 3 : i64, tpu.core_type = #tpu.core_type<tc>, window_params = [{transform_indices = @transform_0, window_bounds = array<i64: 128, 128>}, {pipeline_mode = #tpu.pipeline_mode<synchronous>, transform_indices = @transform_1, window_bounds = array<i64: 128, 128>}, {transform_indices = @transform_2, window_bounds = array<i64: 128, 1>}, {transform_indices = @transform_3, window_bounds = array<i64: 128, 1>}, {transform_indices = @transform_4, window_bounds = array<i64: 1, 128>}, {pipeline_mode = #tpu.pipeline_mode<synchronous>, transform_indices = @transform_5, window_bounds = array<i64: 128, 128>}, {pipeline_mode = #tpu.pipeline_mode<synchronous>, transform_indices = @transform_6, window_bounds = array<i64: 1, 128>}, {pipeline_mode = #tpu.pipeline_mode<synchronous>, transform_indices = @transform_7, window_bounds = array<i64: 128, 384>}, {pipeline_mode = #tpu.pipeline_mode<synchronous>, transform_indices = @transform_8, window_bounds = array<i64: 1, 384>}, {pipeline_mode = #tpu.pipeline_mode<synchronous>, transform_indices = @transform_9, window_bounds = array<i64: 1, 128>}, {pipeline_mode = #tpu.pipeline_mode<synchronous>, transform_indices = @transform_10, window_bounds = array<i64: 1, 128>}, {pipeline_mode = #tpu.pipeline_mode<synchronous>, transform_indices = @transform_11, window_bounds = array<i64: 1, 128>}, {pipeline_mode = #tpu.pipeline_mode<synchronous>, transform_indices = @transform_12, window_bounds = array<i64: 1, 128>}, {transform_indices = @transform_13, window_bounds = array<i64: 128, 128>}, {pipeline_mode = #tpu.pipeline_mode<synchronous>, transform_indices = @transform_14, window_bounds = array<i64: 128, 128>}]} {
    %0 = tpu.iota {dimensions = array<i32: 1>} : vector<1x128xi32>
    %c32_i32 = arith.constant 32 : i32
    %1 = vector.broadcast %c32_i32 : i32 to vector<1x128xi32>
    %2 = arith.cmpi slt, %0, %1 : vector<1x128xi32>
    %3 = arith.extui %2 : vector<1x128xi1> to vector<1x128xi32>
    %4 = arith.sitofp %3 : vector<1x128xi32> to vector<1x128xf32>
    %c0_i32 = arith.constant 0 : i32
    %5 = arith.cmpi eq, %arg0, %c0_i32 : i32
    %6 = arith.extui %5 : i1 to i32
    %c0_i32_0 = arith.constant 0 : i32
    %7 = arith.cmpi ne, %6, %c0_i32_0 : i32
    scf.if %7 {
      %c0_38 = arith.constant 0 : index
      %c0_39 = arith.constant 0 : index
      %85 = vector.load %arg2[%c0_38, %c0_39] : memref<128x128xf32, #tpu.memory_space<vmem>>, vector<128x128xf32>
      %86 = arith.truncf %85 : vector<128x128xf32> to vector<128x128xbf16>
      %c0_40 = arith.constant 0 : index
      %c0_41 = arith.constant 0 : index
      %87 = vector.load %arg8[%c0_40, %c0_41] : memref<128x384xbf16, #tpu.memory_space<vmem>>, vector<128x384xbf16>
      %cst_42 = arith.constant dense<0.000000e+00> : vector<128x384xf32>
      %88 = tpu.matmul %86, %87, %cst_42 {dimension_numbers = #tpu.dot_dimension_numbers<[1], [0], [0], [1], [0, 0, 1, 1], [], []>} : vector<128x128xbf16>, vector<128x384xbf16>, vector<128x384xf32> -> vector<128x384xf32>
      %c0_43 = arith.constant 0 : index
      %c0_44 = arith.constant 0 : index
      %89 = vector.load %arg9[%c0_43, %c0_44] : memref<1x384xf32, #tpu.memory_space<vmem>>, vector<1x384xf32>
      %90 = vector.broadcast %89 : vector<1x384xf32> to vector<128x384xf32>
      %91 = arith.addf %88, %90 : vector<128x384xf32>
      %92 = vector.extract_strided_slice %91 {offsets = [0, 0], sizes = [128, 128], strides = [1, 1]} : vector<128x384xf32> to vector<128x128xf32>
      %93 = arith.truncf %92 : vector<128x128xf32> to vector<128x128xbf16>
      %c0_45 = arith.constant 0 : index
      %c0_46 = arith.constant 0 : index
      %94 = vector.load %arg16[%c0_45, %c0_46] : memref<128x128xbf16, #tpu.memory_space<vmem>>, vector<128x128xbf16>
      tpu.vector_store %arg16[%c0_45, %c0_46], %93 {strides = array<i32>} : memref<128x128xbf16, #tpu.memory_space<vmem>>, vector<128x128xbf16>,
      %95 = vector.extract_strided_slice %91 {offsets = [0, 128], sizes = [128, 128], strides = [1, 1]} : vector<128x384xf32> to vector<128x128xf32>
      %96 = arith.truncf %95 : vector<128x128xf32> to vector<128x128xbf16>
      %c0_47 = arith.constant 0 : index
      %c0_48 = arith.constant 0 : index
      %97 = vector.load %arg17[%c0_47, %c0_48] : memref<128x128xbf16, #tpu.memory_space<vmem>>, vector<128x128xbf16>
      tpu.vector_store %arg17[%c0_47, %c0_48], %96 {strides = array<i32>} : memref<128x128xbf16, #tpu.memory_space<vmem>>, vector<128x128xbf16>,
      %98 = vector.extract_strided_slice %91 {offsets = [0, 256], sizes = [128, 128], strides = [1, 1]} : vector<128x384xf32> to vector<128x128xf32>
      %c0_49 = arith.constant 0 : index
      %c0_50 = arith.constant 0 : index
      %99 = vector.load %arg18[%c0_49, %c0_50] : memref<128x128xf32, #tpu.memory_space<vmem>>, vector<128x128xf32>
      tpu.vector_store %arg18[%c0_49, %c0_50], %98 {strides = array<i32>} : memref<128x128xf32, #tpu.memory_space<vmem>>, vector<128x128xf32>,
    } else {
    }
    %c0 = arith.constant 0 : index
    %c0_1 = arith.constant 0 : index
    %8 = vector.load %arg3[%c0, %c0_1] : memref<128x1xi32, #tpu.memory_space<vmem>>, vector<128x1xi32>
    %c0_2 = arith.constant 0 : index
    %c0_3 = arith.constant 0 : index
    %9 = vector.load %arg4[%c0_2, %c0_3] : memref<128x1xi32, #tpu.memory_space<vmem>>, vector<128x1xi32>
    %c0_4 = arith.constant 0 : index
    %c0_5 = arith.constant 0 : index
    %10 = vector.load %arg5[%c0_4, %c0_5] : memref<1x128xi32, #tpu.memory_space<vmem>>, vector<1x128xi32>
    %11 = tpu.iota {dimensions = array<i32: 1>} : vector<128x128xi32>
    %12 = vector.broadcast %8 : vector<128x1xi32> to vector<128x128xi32>
    %13 = arith.cmpi eq, %11, %12 : vector<128x128xi32>
    %14 = arith.extui %13 : vector<128x128xi1> to vector<128x128xi32>
    %15 = arith.sitofp %14 : vector<128x128xi32> to vector<128x128xf32>
    %16 = arith.truncf %15 : vector<128x128xf32> to vector<128x128xbf16>
    %17 = vector.broadcast %9 : vector<128x1xi32> to vector<128x128xi32>
    %18 = arith.cmpi eq, %11, %17 : vector<128x128xi32>
    %19 = arith.extui %18 : vector<128x128xi1> to vector<128x128xi32>
    %20 = arith.sitofp %19 : vector<128x128xi32> to vector<128x128xf32>
    %21 = arith.truncf %20 : vector<128x128xf32> to vector<128x128xbf16>
    %22 = tpu.iota {dimensions = array<i32: 0>} : vector<128x128xi32>
    %23 = vector.broadcast %10 : vector<1x128xi32> to vector<128x128xi32>
    %24 = arith.cmpi eq, %22, %23 : vector<128x128xi32>
    %25 = arith.extui %24 : vector<128x128xi1> to vector<128x128xi32>
    %26 = arith.sitofp %25 : vector<128x128xi32> to vector<128x128xf32>
    %27 = arith.truncf %26 : vector<128x128xf32> to vector<128x128xbf16>
    %c0_6 = arith.constant 0 : index
    %c0_7 = arith.constant 0 : index
    %28 = vector.load %arg1[%c0_6, %c0_7] : memref<128x128xf32, #tpu.memory_space<vmem>>, vector<128x128xf32>
    %29 = arith.truncf %28 : vector<128x128xf32> to vector<128x128xbf16>
    %c0_8 = arith.constant 0 : index
    %c0_9 = arith.constant 0 : index
    %30 = vector.load %arg6[%c0_8, %c0_9] : memref<128x128xbf16, #tpu.memory_space<vmem>>, vector<128x128xbf16>
    %cst = arith.constant dense<0.000000e+00> : vector<128x128xf32>
    %31 = tpu.matmul %29, %30, %cst {dimension_numbers = #tpu.dot_dimension_numbers<[1], [0], [0], [1], [0, 0, 1, 1], [], []>} : vector<128x128xbf16>, vector<128x128xbf16>, vector<128x128xf32> -> vector<128x128xf32>
    %c0_10 = arith.constant 0 : index
    %c0_11 = arith.constant 0 : index
    %32 = vector.load %arg7[%c0_10, %c0_11] : memref<1x128xf32, #tpu.memory_space<vmem>>, vector<1x128xf32>
    %33 = vector.broadcast %32 : vector<1x128xf32> to vector<128x128xf32>
    %34 = arith.addf %31, %33 : vector<128x128xf32>
    %35 = arith.addf %16, %21 : vector<128x128xbf16>
    %c0_12 = arith.constant 0 : index
    %c0_13 = arith.constant 0 : index
    %36 = vector.load %arg16[%c0_12, %c0_13] : memref<128x128xbf16, #tpu.memory_space<vmem>>, vector<128x128xbf16>
    %cst_14 = arith.constant dense<0.000000e+00> : vector<128x128xf32>
    %37 = tpu.matmul %35, %36, %cst_14 {dimension_numbers = #tpu.dot_dimension_numbers<[1], [0], [0], [1], [0, 0, 1, 1], [], []>} : vector<128x128xbf16>, vector<128x128xbf16>, vector<128x128xf32> -> vector<128x128xf32>
    %38 = arith.addf %34, %37 : vector<128x128xf32>
    %39 = arith.negf %38 : vector<128x128xf32>
    %40 = math.exp %39 : vector<128x128xf32>
    %cst_15 = arith.constant 1.000000e+00 : f32
    %41 = vector.broadcast %cst_15 : f32 to vector<128x128xf32>
    %42 = arith.addf %41, %40 : vector<128x128xf32>
    %43 = arith.divf %41, %42 : vector<128x128xf32>
    %c0_16 = arith.constant 0 : index
    %c0_17 = arith.constant 0 : index
    %44 = vector.load %arg17[%c0_16, %c0_17] : memref<128x128xbf16, #tpu.memory_space<vmem>>, vector<128x128xbf16>
    %cst_18 = arith.constant dense<0.000000e+00> : vector<128x128xf32>
    %45 = tpu.matmul %16, %44, %cst_18 {dimension_numbers = #tpu.dot_dimension_numbers<[1], [0], [0], [1], [0, 0, 1, 1], [], []>} : vector<128x128xbf16>, vector<128x128xbf16>, vector<128x128xf32> -> vector<128x128xf32>
    %46 = arith.mulf %43, %45 : vector<128x128xf32>
    %47 = arith.truncf %46 : vector<128x128xf32> to vector<128x128xbf16>
    %c0_19 = arith.constant 0 : index
    %c0_20 = arith.constant 0 : index
    %48 = vector.load %arg18[%c0_19, %c0_20] : memref<128x128xf32, #tpu.memory_space<vmem>>, vector<128x128xf32>
    %cst_21 = arith.constant dense<0.000000e+00> : vector<128x128xf32>
    %49 = tpu.matmul %27, %47, %cst_21 {dimension_numbers = #tpu.dot_dimension_numbers<[1], [0], [0], [1], [0, 0, 1, 1], [], []>} : vector<128x128xbf16>, vector<128x128xbf16>, vector<128x128xf32> -> vector<128x128xf32>
    %50 = arith.addf %48, %49 : vector<128x128xf32>
    %c0_22 = arith.constant 0 : index
    %c0_23 = arith.constant 0 : index
    %51 = vector.load %arg18[%c0_22, %c0_23] : memref<128x128xf32, #tpu.memory_space<vmem>>, vector<128x128xf32>
    tpu.vector_store %arg18[%c0_22, %c0_23], %50 {strides = array<i32>} : memref<128x128xf32, #tpu.memory_space<vmem>>, vector<128x128xf32>,
    %c0_24 = arith.constant 0 : index
    %c0_25 = arith.constant 0 : index
    %52 = vector.load %arg10[%c0_24, %c0_25] : memref<1x128xf32, #tpu.memory_space<vmem>>, vector<1x128xf32>
    %c0_26 = arith.constant 0 : index
    %c0_27 = arith.constant 0 : index
    %53 = vector.load %arg11[%c0_26, %c0_27] : memref<1x128xf32, #tpu.memory_space<vmem>>, vector<1x128xf32>
    %54 = vector.broadcast %4 : vector<1x128xf32> to vector<128x128xf32>
    %55 = arith.mulf %38, %54 : vector<128x128xf32>
    %cst_28 = arith.constant dense<0.000000e+00> : vector<128xf32>
    %56 = vector.multi_reduction <add>, %55, %cst_28 [1] : vector<128x128xf32> to vector<128xf32>
    %57 = vector.shape_cast %56 : vector<128xf32> to vector<128x1xf32>
    %cst_29 = arith.constant 3.125000e-02 : f32
    %58 = vector.broadcast %cst_29 : f32 to vector<128x1xf32>
    %59 = arith.mulf %57, %58 : vector<128x1xf32>
    %60 = vector.broadcast %59 : vector<128x1xf32> to vector<128x128xf32>
    %61 = arith.subf %38, %60 : vector<128x128xf32>
    %62 = vector.broadcast %4 : vector<1x128xf32> to vector<128x128xf32>
    %63 = arith.mulf %61, %62 : vector<128x128xf32>
    %64 = arith.mulf %63, %63 : vector<128x128xf32>
    %cst_30 = arith.constant dense<0.000000e+00> : vector<128xf32>
    %65 = vector.multi_reduction <add>, %64, %cst_30 [1] : vector<128x128xf32> to vector<128xf32>
    %66 = vector.shape_cast %65 : vector<128xf32> to vector<128x1xf32>
    %cst_31 = arith.constant 3.125000e-02 : f32
    %67 = vector.broadcast %cst_31 : f32 to vector<128x1xf32>
    %68 = arith.mulf %66, %67 : vector<128x1xf32>
    %cst_32 = arith.constant 9.99999974E-6 : f32
    %69 = vector.broadcast %cst_32 : f32 to vector<128x1xf32>
    %70 = arith.addf %68, %69 : vector<128x1xf32>
    %71 = math.rsqrt %70 : vector<128x1xf32>
    %72 = vector.broadcast %71 : vector<128x1xf32> to vector<128x128xf32>
    %73 = arith.mulf %63, %72 : vector<128x128xf32>
    %74 = vector.broadcast %52 : vector<1x128xf32> to vector<128x128xf32>
    %75 = arith.mulf %73, %74 : vector<128x128xf32>
    %76 = vector.broadcast %53 : vector<1x128xf32> to vector<128x128xf32>
    %77 = arith.addf %75, %76 : vector<128x128xf32>
    %cst_33 = arith.constant 0.000000e+00 : f32
    %78 = vector.broadcast %cst_33 : f32 to vector<128x128xf32>
    %79 = arith.maximumf %77, %78 : vector<128x128xf32>
    %80 = arith.addf %28, %79 : vector<128x128xf32>
    %c0_34 = arith.constant 0 : index
    %c0_35 = arith.constant 0 : index
    %81 = vector.load %arg14[%c0_34, %c0_35] : memref<128x128xf32, #tpu.memory_space<vmem>>, vector<128x128xf32>
    tpu.vector_store %arg14[%c0_34, %c0_35], %80 {strides = array<i32>} : memref<128x128xf32, #tpu.memory_space<vmem>>, vector<128x128xf32>,
    %c0_i32_36 = arith.constant 0 : i32
    %82 = arith.cmpi eq, %arg0, %c0_i32_36 : i32
    %83 = arith.extui %82 : i1 to i32
    %c0_i32_37 = arith.constant 0 : i32
    %84 = arith.cmpi ne, %83, %c0_i32_37 : i32
    scf.if %84 {
      %c0_38 = arith.constant 0 : index
      %c0_39 = arith.constant 0 : index
      %85 = vector.load %arg2[%c0_38, %c0_39] : memref<128x128xf32, #tpu.memory_space<vmem>>, vector<128x128xf32>
      %c0_40 = arith.constant 0 : index
      %c0_41 = arith.constant 0 : index
      %86 = vector.load %arg18[%c0_40, %c0_41] : memref<128x128xf32, #tpu.memory_space<vmem>>, vector<128x128xf32>
      %c0_42 = arith.constant 0 : index
      %c0_43 = arith.constant 0 : index
      %87 = vector.load %arg12[%c0_42, %c0_43] : memref<1x128xf32, #tpu.memory_space<vmem>>, vector<1x128xf32>
      %c0_44 = arith.constant 0 : index
      %c0_45 = arith.constant 0 : index
      %88 = vector.load %arg13[%c0_44, %c0_45] : memref<1x128xf32, #tpu.memory_space<vmem>>, vector<1x128xf32>
      %89 = vector.broadcast %4 : vector<1x128xf32> to vector<128x128xf32>
      %90 = arith.mulf %86, %89 : vector<128x128xf32>
      %cst_46 = arith.constant dense<0.000000e+00> : vector<128xf32>
      %91 = vector.multi_reduction <add>, %90, %cst_46 [1] : vector<128x128xf32> to vector<128xf32>
      %92 = vector.shape_cast %91 : vector<128xf32> to vector<128x1xf32>
      %cst_47 = arith.constant 3.125000e-02 : f32
      %93 = vector.broadcast %cst_47 : f32 to vector<128x1xf32>
      %94 = arith.mulf %92, %93 : vector<128x1xf32>
      %95 = vector.broadcast %94 : vector<128x1xf32> to vector<128x128xf32>
      %96 = arith.subf %86, %95 : vector<128x128xf32>
      %97 = vector.broadcast %4 : vector<1x128xf32> to vector<128x128xf32>
      %98 = arith.mulf %96, %97 : vector<128x128xf32>
      %99 = arith.mulf %98, %98 : vector<128x128xf32>
      %cst_48 = arith.constant dense<0.000000e+00> : vector<128xf32>
      %100 = vector.multi_reduction <add>, %99, %cst_48 [1] : vector<128x128xf32> to vector<128xf32>
      %101 = vector.shape_cast %100 : vector<128xf32> to vector<128x1xf32>
      %cst_49 = arith.constant 3.125000e-02 : f32
      %102 = vector.broadcast %cst_49 : f32 to vector<128x1xf32>
      %103 = arith.mulf %101, %102 : vector<128x1xf32>
      %cst_50 = arith.constant 9.99999974E-6 : f32
      %104 = vector.broadcast %cst_50 : f32 to vector<128x1xf32>
      %105 = arith.addf %103, %104 : vector<128x1xf32>
      %106 = math.rsqrt %105 : vector<128x1xf32>
      %107 = vector.broadcast %106 : vector<128x1xf32> to vector<128x128xf32>
      %108 = arith.mulf %98, %107 : vector<128x128xf32>
      %109 = vector.broadcast %87 : vector<1x128xf32> to vector<128x128xf32>
      %110 = arith.mulf %108, %109 : vector<128x128xf32>
      %111 = vector.broadcast %88 : vector<1x128xf32> to vector<128x128xf32>
      %112 = arith.addf %110, %111 : vector<128x128xf32>
      %cst_51 = arith.constant 0.000000e+00 : f32
      %113 = vector.broadcast %cst_51 : f32 to vector<128x128xf32>
      %114 = arith.maximumf %112, %113 : vector<128x128xf32>
      %115 = arith.addf %85, %114 : vector<128x128xf32>
      %c0_52 = arith.constant 0 : index
      %c0_53 = arith.constant 0 : index
      %116 = vector.load %arg15[%c0_52, %c0_53] : memref<128x128xf32, #tpu.memory_space<vmem>>, vector<128x128xf32>
      tpu.vector_store %arg15[%c0_52, %c0_53], %115 {strides = array<i32>} : memref<128x128xf32, #tpu.memory_space<vmem>>, vector<128x128xf32>,
    } else {
    }
    return
  }
  func.func @transform_0(%arg0: i32) -> (i32, i32) {
    %c0_i32 = arith.constant 0 : i32
    %c0_i32_0 = arith.constant 0 : i32
    return %arg0, %c0_i32 : i32, i32
  }
  func.func @transform_1(%arg0: i32) -> (i32, i32) {
    %c0_i32 = arith.constant 0 : i32
    %c0_i32_0 = arith.constant 0 : i32
    %c0_i32_1 = arith.constant 0 : i32
    return %c0_i32, %c0_i32_0 : i32, i32
  }
  func.func @transform_2(%arg0: i32) -> (i32, i32) {
    %c0_i32 = arith.constant 0 : i32
    %c0_i32_0 = arith.constant 0 : i32
    return %arg0, %c0_i32 : i32, i32
  }
  func.func @transform_3(%arg0: i32) -> (i32, i32) {
    %c0_i32 = arith.constant 0 : i32
    %c0_i32_0 = arith.constant 0 : i32
    return %arg0, %c0_i32 : i32, i32
  }
  func.func @transform_4(%arg0: i32) -> (i32, i32) {
    %c0_i32 = arith.constant 0 : i32
    %c0_i32_0 = arith.constant 0 : i32
    return %c0_i32, %arg0 : i32, i32
  }
  func.func @transform_5(%arg0: i32) -> (i32, i32) {
    %c0_i32 = arith.constant 0 : i32
    %c0_i32_0 = arith.constant 0 : i32
    %c0_i32_1 = arith.constant 0 : i32
    return %c0_i32, %c0_i32_0 : i32, i32
  }
  func.func @transform_6(%arg0: i32) -> (i32, i32) {
    %c0_i32 = arith.constant 0 : i32
    %c0_i32_0 = arith.constant 0 : i32
    %c0_i32_1 = arith.constant 0 : i32
    return %c0_i32, %c0_i32_0 : i32, i32
  }
  func.func @transform_7(%arg0: i32) -> (i32, i32) {
    %c0_i32 = arith.constant 0 : i32
    %c0_i32_0 = arith.constant 0 : i32
    %c0_i32_1 = arith.constant 0 : i32
    return %c0_i32, %c0_i32_0 : i32, i32
  }
  func.func @transform_8(%arg0: i32) -> (i32, i32) {
    %c0_i32 = arith.constant 0 : i32
    %c0_i32_0 = arith.constant 0 : i32
    %c0_i32_1 = arith.constant 0 : i32
    return %c0_i32, %c0_i32_0 : i32, i32
  }
  func.func @transform_9(%arg0: i32) -> (i32, i32) {
    %c0_i32 = arith.constant 0 : i32
    %c0_i32_0 = arith.constant 0 : i32
    %c0_i32_1 = arith.constant 0 : i32
    return %c0_i32, %c0_i32_0 : i32, i32
  }
  func.func @transform_10(%arg0: i32) -> (i32, i32) {
    %c0_i32 = arith.constant 0 : i32
    %c0_i32_0 = arith.constant 0 : i32
    %c0_i32_1 = arith.constant 0 : i32
    return %c0_i32, %c0_i32_0 : i32, i32
  }
  func.func @transform_11(%arg0: i32) -> (i32, i32) {
    %c0_i32 = arith.constant 0 : i32
    %c0_i32_0 = arith.constant 0 : i32
    %c0_i32_1 = arith.constant 0 : i32
    return %c0_i32, %c0_i32_0 : i32, i32
  }
  func.func @transform_12(%arg0: i32) -> (i32, i32) {
    %c0_i32 = arith.constant 0 : i32
    %c0_i32_0 = arith.constant 0 : i32
    %c0_i32_1 = arith.constant 0 : i32
    return %c0_i32, %c0_i32_0 : i32, i32
  }
  func.func @transform_13(%arg0: i32) -> (i32, i32) {
    %c0_i32 = arith.constant 0 : i32
    %c0_i32_0 = arith.constant 0 : i32
    return %arg0, %c0_i32 : i32, i32
  }
  func.func @transform_14(%arg0: i32) -> (i32, i32) {
    %c0_i32 = arith.constant 0 : i32
    %c0_i32_0 = arith.constant 0 : i32
    %c0_i32_1 = arith.constant 0 : i32
    return %c0_i32, %c0_i32_0 : i32, i32
  }
}

</mosaic_0001>

<llo_original>
// kernel: residual_gated_gcn_layer.1
$region0: #{residual_gated_gcn_layer.1}
  #allocation0 [shape = 'u32[]', space=smem, size = 0x4, offset = 0x4, fixed_abs, tag = 'smem constant byte address 0x4 - core index']
  #allocation1 [shape = 'u32[144,128]{1,0:T(1,128)}', space=vmem, size = 0x12000, scoped, tag = 'internal scratch']
  #allocation2 [shape = 'bf16[128,128]{1,0:T(16,128)(2,1)}', space=vmem, size = 0x8000, scoped, tag = 'scratch operand']
  #allocation3 [shape = 'bf16[128,128]{1,0:T(16,128)(2,1)}', space=vmem, size = 0x8000, scoped, tag = 'scratch operand']
  #allocation4 [shape = 'f32[128,128]{1,0:T(8,128)}', space=vmem, size = 0x10000, scoped, tag = 'scratch operand']
  %s0 = inlined_call_operand.vmem [shape: f32[128,128], index: 0, kind: input, shape index: {}]
  %s1 = inlined_call_operand.vmem [shape: f32[128,128], index: 1, kind: input, shape index: {}]
  %s2 = inlined_call_operand.vmem [shape: s32[128,1], index: 2, kind: input, shape index: {}]
  %s3 = inlined_call_operand.vmem [shape: s32[128,1], index: 3, kind: input, shape index: {}]
  %s4 = inlined_call_operand.vmem [shape: s32[1,128], index: 4, kind: input, shape index: {}]
  %s5 = inlined_call_operand.vmem [shape: bf16[128,128], index: 5, kind: input, shape index: {}]
  %s6 = inlined_call_operand.vmem [shape: f32[1,128], index: 6, kind: input, shape index: {}]
  %s7 = inlined_call_operand.vmem [shape: bf16[128,384], index: 7, kind: input, shape index: {}]
  %s8 = inlined_call_operand.vmem [shape: f32[1,384], index: 8, kind: input, shape index: {}]
  %s9 = inlined_call_operand.vmem [shape: f32[1,128], index: 9, kind: input, shape index: {}]
  %s10 = inlined_call_operand.vmem [shape: f32[1,128], index: 10, kind: input, shape index: {}]
  %s11 = inlined_call_operand.vmem [shape: f32[1,128], index: 11, kind: input, shape index: {}]
  %s12 = inlined_call_operand.vmem [shape: f32[1,128], index: 12, kind: input, shape index: {}]
  %s13 = inlined_call_operand.vmem [shape: f32[128,128], index: 13, kind: output, shape index: {0}]
  %s14 = inlined_call_operand.vmem [shape: f32[128,128], index: 14, kind: output, shape index: {1}]
  %15 = xla_tuple %s13, %s14
  %s16 = sld [smem:[#allocation0]]
  $region78: #{residual_gated_gcn_layer.1} parent=0
    _
  %s18 = ssub.s32 1, %s16
  %s19 = scalar_select 0, %s18, %s16
  // Predicated region
  $region2: #{residual_gated_gcn_layer.1} parent=0 // pred_check
    _
  $region3: #{residual_gated_gcn_layer.1} parent=0 // pred_check_branch
    %21 = sbr.rel (0) target = $region5
  $region4: #{residual_gated_gcn_layer.1} parent=0 // pred_region
    _
  $region5: #{residual_gated_gcn_layer.1} parent=0 // pred_fallthru
    _
  // Predicated region
  $region6: #{residual_gated_gcn_layer.1} parent=0 // pred_check
    _
  $region7: #{residual_gated_gcn_layer.1} parent=0 // pred_check_branch
    %23 = sbr.rel (0) target = $region9
  $region8: #{residual_gated_gcn_layer.1} parent=0 // pred_region
    _
  $region9: #{residual_gated_gcn_layer.1} parent=0 // pred_fallthru
    _
  // Predicated region
  $region10: #{residual_gated_gcn_layer.1} parent=0 // pred_check
    _
  $region11: #{residual_gated_gcn_layer.1} parent=0 // pred_check_branch
    %25 = sbr.rel (0) target = $region13
  $region12: #{residual_gated_gcn_layer.1} parent=0 // pred_region
    _
  $region13: #{residual_gated_gcn_layer.1} parent=0 // pred_fallthru
    _
  // Predicated region
  $region14: #{residual_gated_gcn_layer.1} parent=0 // pred_check
    _
  $region15: #{residual_gated_gcn_layer.1} parent=0 // pred_check_branch
    %27 = sbr.rel (0) target = $region17
  $region16: #{residual_gated_gcn_layer.1} parent=0 // pred_region
    _
  $region17: #{residual_gated_gcn_layer.1} parent=0 // pred_fallthru
    _
  // Predicated region
  $region18: #{residual_gated_gcn_layer.1} parent=0 // pred_check
    _
  $region19: #{residual_gated_gcn_layer.1} parent=0 // pred_check_branch
    %29 = sbr.rel (0) target = $region21
  $region20: #{residual_gated_gcn_layer.1} parent=0 // pred_region
    _
  $region21: #{residual_gated_gcn_layer.1} parent=0 // pred_fallthru
    _
  // Predicated region
  $region22: #{residual_gated_gcn_layer.1} parent=0 // pred_check
    _
  $region23: #{residual_gated_gcn_layer.1} parent=0 // pred_check_branch
    %31 = sbr.rel (0) target = $region25
  $region24: #{residual_gated_gcn_layer.1} parent=0 // pred_region
    _
  $region25: #{residual_gated_gcn_layer.1} parent=0 // pred_fallthru
    _
  // Predicated region
  $region26: #{residual_gated_gcn_layer.1} parent=0 // pred_check
    _
  $region27: #{residual_gated_gcn_layer.1} parent=0 // pred_check_branch
    %33 = sbr.rel (0) target = $region29
  $region28: #{residual_gated_gcn_layer.1} parent=0 // pred_region
    _
  $region29: #{residual_gated_gcn_layer.1} parent=0 // pred_fallthru
    _
  // Predicated region
  $region30: #{residual_gated_gcn_layer.1} parent=0 // pred_check
    _
  $region31: #{residual_gated_gcn_layer.1} parent=0 // pred_check_branch
    %35 = sbr.rel (0) target = $region33
  $region32: #{residual_gated_gcn_layer.1} parent=0 // pred_region
    _
  $region33: #{residual_gated_gcn_layer.1} parent=0 // pred_fallthru
    _
  // Predicated region
  $region34: #{residual_gated_gcn_layer.1} parent=0 // pred_check
    _
  $region35: #{residual_gated_gcn_layer.1} parent=0 // pred_check_branch
    %37 = sbr.rel (0) target = $region37
  $region36: #{residual_gated_gcn_layer.1} parent=0 // pred_region
    _
  $region37: #{residual_gated_gcn_layer.1} parent=0 // pred_fallthru
    _
  // Predicated region
  $region38: #{residual_gated_gcn_layer.1} parent=0 // pred_check
    _
  $region39: #{residual_gated_gcn_layer.1} parent=0 // pred_check_branch
    %39 = sbr.rel (0) target = $region41
  $region40: #{residual_gated_gcn_layer.1} parent=0 // pred_region
    _
  $region41: #{residual_gated_gcn_layer.1} parent=0 // pred_fallthru
    _
  // Predicated region
  $region42: #{residual_gated_gcn_layer.1} parent=0 // pred_check
    _
  $region43: #{residual_gated_gcn_layer.1} parent=0 // pred_check_branch
    %41 = sbr.rel (0) target = $region45
  $region44: #{residual_gated_gcn_layer.1} parent=0 // pred_region
    _
  $region45: #{residual_gated_gcn_layer.1} parent=0 // pred_fallthru
    _
  // Predicated region
  $region46: #{residual_gated_gcn_layer.1} parent=0 // pred_check
    _
  $region47: #{residual_gated_gcn_layer.1} parent=0 // pred_check_branch
    %43 = sbr.rel (0) target = $region49
  $region48: #{residual_gated_gcn_layer.1} parent=0 // pred_region
    _
  $region49: #{residual_gated_gcn_layer.1} parent=0 // pred_fallthru
    _
  // Predicated region
  $region50: #{residual_gated_gcn_layer.1} parent=0 // pred_check
    _
  $region51: #{residual_gated_gcn_layer.1} parent=0 // pred_check_branch
    %45 = sbr.rel (0) target = $region53
  $region52: #{residual_gated_gcn_layer.1} parent=0 // pred_region
    _
  $region53: #{residual_gated_gcn_layer.1} parent=0 // pred_fallthru
    _
  %v47 = vlaneseq
  %v48 = vand.u32 %v47, 127
  %vm49 = vcmp.lt.s32.totalorder %v48, 32
  %v50 = vsel %vm49, 1, 0
  %v51 = vcvt.s32.f32 %v50
  %p52 = scmp.eq.s32.totalorder 0, 0
  // Predicated region
  $region54: #{residual_gated_gcn_layer.1} parent=0 // pred_check
    %p53 = pneg %p52
  $region55: #{residual_gated_gcn_layer.1} parent=0 // pred_check_branch
    %55 = sbr.rel (%p53) target = $region57
  $region56: #{residual_gated_gcn_layer.1} parent=0 // pred_region
    %v56 = vld [vmem:[%s1] sm:$0xff]
    %v57 = vld [vmem:[%s1 + $0x8] sm:$0xff]
    %v58 = vld [vmem:[%s1 + $0x10] sm:$0xff]
    %v59 = vld [vmem:[%s1 + $0x18] sm:$0xff]
    %v60 = vld [vmem:[%s1 + $0x20] sm:$0xff]
    %v61 = vld [vmem:[%s1 + $0x28] sm:$0xff]
    %v62 = vld [vmem:[%s1 + $0x30] sm:$0xff]
    %v63 = vld [vmem:[%s1 + $0x38] sm:$0xff]
    %v64 = vld [vmem:[%s1 + $0x40] sm:$0xff]
    %v65 = vld [vmem:[%s1 + $0x48] sm:$0xff]
    %v66 = vld [vmem:[%s1 + $0x50] sm:$0xff]
    %v67 = vld [vmem:[%s1 + $0x58] sm:$0xff]
    %v68 = vld [vmem:[%s1 + $0x60] sm:$0xff]
    %v69 = vld [vmem:[%s1 + $0x68] sm:$0xff]
    %v70 = vld [vmem:[%s1 + $0x70] sm:$0xff]
    %v71 = vld [vmem:[%s1 + $0x78] sm:$0xff]
    %v72 = vpack.c.bf16 %v57, %v56
    %v73 = vpack.c.bf16 %v59, %v58
    %v74 = vpack.c.bf16 %v61, %v60
    %v75 = vpack.c.bf16 %v63, %v62
    %v76 = vpack.c.bf16 %v65, %v64
    %v77 = vpack.c.bf16 %v67, %v66
    %v78 = vpack.c.bf16 %v69, %v68
    %v79 = vpack.c.bf16 %v71, %v70
    %v80 = vld [vmem:[%s7] sm:$0xff]
    %v81 = vld [vmem:[%s7 + $0x8] sm:$0xf]
    %v82 = vld [vmem:[%s7 + $0xc] sm:$0xff]
    %v83 = vld [vmem:[%s7 + $0x14] sm:$0xf]
    %v84 = vld [vmem:[%s7 + $0x18] sm:$0xff]
    %v85 = vld [vmem:[%s7 + $0x20] sm:$0xf]
    %v86 = vld [vmem:[%s7 + $0x24] sm:$0xff]
    %v87 = vld [vmem:[%s7 + $0x2c] sm:$0xf]
    %v88 = vld [vmem:[%s7 + $0x30] sm:$0xff]
    %v89 = vld [vmem:[%s7 + $0x38] sm:$0xf]
    %v90 = vld [vmem:[%s7 + $0x3c] sm:$0xff]
    %v91 = vld [vmem:[%s7 + $0x44] sm:$0xf]
    %v92 = vld [vmem:[%s7 + $0x48] sm:$0xff]
    %v93 = vld [vmem:[%s7 + $0x50] sm:$0xf]
    %v94 = vld [vmem:[%s7 + $0x54] sm:$0xff]
    %v95 = vld [vmem:[%s7 + $0x5c] sm:$0xf]
    %v96 = vld [vmem:[%s7 + $0x60] sm:$0xff]
    %v97 = vld [vmem:[%s7 + $0x68] sm:$0xf]
    %v98 = vld [vmem:[%s7 + $0x6c] sm:$0xff]
    %v99 = vld [vmem:[%s7 + $0x74] sm:$0xf]
    %v100 = vld [vmem:[%s7 + $0x78] sm:$0xff]
    %v101 = vld [vmem:[%s7 + $0x80] sm:$0xf]
    %v102 = vld [vmem:[%s7 + $0x84] sm:$0xff]
    %v103 = vld [vmem:[%s7 + $0x8c] sm:$0xf]
    %v104 = vld [vmem:[%s7 + $0x90] sm:$0xff]
    %v105 = vld [vmem:[%s7 + $0x98] sm:$0xf]
    %v106 = vld [vmem:[%s7 + $0x9c] sm:$0xff]
    %v107 = vld [vmem:[%s7 + $0xa4] sm:$0xf]
    %v108 = vld [vmem:[%s7 + $0xa8] sm:$0xff]
    %v109 = vld [vmem:[%s7 + $0xb0] sm:$0xf]
    %v110 = vld [vmem:[%s7 + $0xb4] sm:$0xff]
    %v111 = vld [vmem:[%s7 + $0xbc] sm:$0xf]
    %v112 = vld [vmem:[%s8] sm:$0x7]
    %v114 = vlaneseq
    %v115 = vshrl.u32 %v114, 7
    %v116 = vsub.s32 0, %v115
    %v117 = vrot.slane %v112, %v116
    %v118 = vlaneseq
    %v119 = vshrl.u32 %v118, 7
    %v120 = vsub.s32 1, %v119
    %v121 = vrot.slane %v112, %v120
    %v122 = vlaneseq
    %v123 = vshrl.u32 %v122, 7
    %v124 = vsub.s32 2, %v123
    %v125 = vrot.slane %v112, %v124
    %v161 = vunpack.c.l.b16 %v80
    %v162 = vunpack.c.h.b16 %v80
    %v163 = vunpack.c.l.b16 %v81
    %v164 = vunpack.c.l.b16 %v82
    %v165 = vunpack.c.h.b16 %v82
    %v166 = vunpack.c.l.b16 %v83
    %v167 = vunpack.c.l.b16 %v84
    %v168 = vunpack.c.h.b16 %v84
    %v169 = vunpack.c.l.b16 %v85
    %v170 = vunpack.c.l.b16 %v86
    %v171 = vunpack.c.h.b16 %v86
    %v172 = vunpack.c.l.b16 %v87
    %v173 = vunpack.c.l.b16 %v88
    %v174 = vunpack.c.h.b16 %v88
    %v175 = vunpack.c.l.b16 %v89
    %v176 = vunpack.c.l.b16 %v90
    %v177 = vunpack.c.h.b16 %v90
    %v178 = vunpack.c.l.b16 %v91
    %v179 = vunpack.c.l.b16 %v92
    %v180 = vunpack.c.h.b16 %v92
    %v181 = vunpack.c.l.b16 %v93
    %v182 = vunpack.c.l.b16 %v94
    %v183 = vunpack.c.h.b16 %v94
    %v184 = vunpack.c.l.b16 %v95
    %v185 = vunpack.c.l.b16 %v96
    %v186 = vunpack.c.h.b16 %v96
    %v187 = vunpack.c.l.b16 %v97
    %v188 = vunpack.c.l.b16 %v98
    %v189 = vunpack.c.h.b16 %v98
    %v190 = vunpack.c.l.b16 %v99
    %v191 = vunpack.c.l.b16 %v100
    %v192 = vunpack.c.h.b16 %v100
    %v193 = vunpack.c.l.b16 %v101
    %v194 = vunpack.c.l.b16 %v102
    %v195 = vunpack.c.h.b16 %v102
    %v196 = vunpack.c.l.b16 %v103
    %v197 = vunpack.c.l.b16 %v104
    %v198 = vunpack.c.h.b16 %v104
    %v199 = vunpack.c.l.b16 %v105
    %v200 = vunpack.c.l.b16 %v106
    %v201 = vunpack.c.h.b16 %v106
    %v202 = vunpack.c.l.b16 %v107
    %v203 = vunpack.c.l.b16 %v108
    %v204 = vunpack.c.h.b16 %v108
    %v205 = vunpack.c.l.b16 %v109
    %v206 = vunpack.c.l.b16 %v110
    %v207 = vunpack.c.h.b16 %v110
    %v208 = vunpack.c.l.b16 %v111
    %v209 = vpack.c.b16 %v164, %v161
    %v210 = vpack.c.b16 %v165, %v162
    %v211 = vpack.c.b16 %v166, %v163
    %v212 = vpack.c.b16 %v170, %v167
    %v213 = vpack.c.b16 %v171, %v168
    %v214 = vpack.c.b16 %v172, %v169
    %v215 = vpack.c.b16 %v176, %v173
    %v216 = vpack.c.b16 %v177, %v174
    %v217 = vpack.c.b16 %v178, %v175
    %v218 = vpack.c.b16 %v182, %v179
    %v219 = vpack.c.b16 %v183, %v180
    %v220 = vpack.c.b16 %v184, %v181
    %v221 = vpack.c.b16 %v188, %v185
    %v222 = vpack.c.b16 %v189, %v186
    %v223 = vpack.c.b16 %v190, %v187
    %v224 = vpack.c.b16 %v194, %v191
    %v225 = vpack.c.b16 %v195, %v192
    %v226 = vpack.c.b16 %v196, %v193
    %v227 = vpack.c.b16 %v200, %v197
    %v228 = vpack.c.b16 %v201, %v198
    %v229 = vpack.c.b16 %v202, %v199
    %v230 = vpack.c.b16 %v206, %v203
    %v231 = vpack.c.b16 %v207, %v204
    %v232 = vpack.c.b16 %v208, %v205
    %257 = vmatprep.subr.bf16.mxu0 %v210
    %258 = vmatpush1.bf16.msra.mxu0 %v209
    %259 = vmatprep.subr.bf16.mxu0 %v213
    %260 = vmatpush1.bf16.msra.mxu0 %v212
    %261 = vmatprep.subr.bf16.mxu0 %v216
    %262 = vmatpush1.bf16.msra.mxu0 %v215
    %263 = vmatprep.subr.bf16.mxu0 %v219
    %264 = vmatpush1.bf16.msra.mxu0 %v218
    %265 = vmatprep.subr.bf16.mxu0 %v222
    %266 = vmatpush1.bf16.msra.mxu0 %v221
    %267 = vmatprep.subr.bf16.mxu0 %v225
    %268 = vmatpush1.bf16.msra.mxu0 %v224
    %269 = vmatprep.subr.bf16.mxu0 %v228
    %270 = vmatpush1.bf16.msra.mxu0 %v227
    %271 = vmatprep.subr.bf16.mxu0 %v231
    %272 = vmatpush1.bf16.msra.mxu0 %v230
    %273 = vmatprep.subr.bf16.mxu0 0
    %274 = vmatpush1.bf16.msra.mxu0 0
    %275 = vmatprep.subr.bf16.mxu0 0
    %276 = vmatpush1.bf16.msra.mxu0 0
    %277 = vmatprep.subr.bf16.mxu0 0
    %278 = vmatpush1.bf16.msra.mxu0 0
    %279 = vmatprep.subr.bf16.mxu0 0
    %280 = vmatpush1.bf16.msra.mxu0 0
    %281 = vmatprep.subr.bf16.mxu0 0
    %282 = vmatpush1.bf16.msra.mxu0 0
    %283 = vmatprep.subr.bf16.mxu0 0
    %284 = vmatpush1.bf16.msra.mxu0 0
    %285 = vmatprep.subr.bf16.mxu0 0
    %286 = vmatpush1.bf16.msra.mxu0 0
    %287 = vmatprep.subr.bf16.mxu0 0
    %288 = vmatpush1.bf16.msra.mxu0 0
    %289 = vmatprep.mubr.bf16.mxu0 0
    %290 = vmatmul.mubr.bf16.gmra.mrb[0].mxu0 %v72
    %v291 = vpop.f32.mrb[0].mxu0
    %v292 = vadd.f32 %v117, %v291
    %v293 = vpop.f32.mrb[0].mxu0
    %v294 = vadd.f32 %v121, %v293
    %v295 = vpop.f32.mrb[0].mxu0
    %v296 = vadd.f32 %v117, %v295
    %v297 = vpop.f32.mrb[0].mxu0
    %v298 = vadd.f32 %v121, %v297
    %299 = vmatprep.mubr.bf16.mxu0 0
    %300 = vmatmul.mubr.bf16.gmra.mrb[0].mxu0 %v73
    %v301 = vpop.f32.mrb[0].mxu0
    %v302 = vadd.f32 %v117, %v301
    %v303 = vpop.f32.mrb[0].mxu0
    %v304 = vadd.f32 %v121, %v303
    %v305 = vpop.f32.mrb[0].mxu0
    %v306 = vadd.f32 %v117, %v305
    %v307 = vpop.f32.mrb[0].mxu0
    %v308 = vadd.f32 %v121, %v307
    %309 = vmatprep.mubr.bf16.mxu0 0
    %310 = vmatmul.mubr.bf16.gmra.mrb[0].mxu0 %v74
    %v311 = vpop.f32.mrb[0].mxu0
    %v312 = vadd.f32 %v117, %v311
    %v313 = vpop.f32.mrb[0].mxu0
    %v314 = vadd.f32 %v121, %v313
    %v315 = vpop.f32.mrb[0].mxu0
    %v316 = vadd.f32 %v117, %v315
    %v317 = vpop.f32.mrb[0].mxu0
    %v318 = vadd.f32 %v121, %v317
    %319 = vmatprep.mubr.bf16.mxu0 0
    %320 = vmatmul.mubr.bf16.gmra.mrb[0].mxu0 %v75
    %v321 = vpop.f32.mrb[0].mxu0
    %v322 = vadd.f32 %v117, %v321
    %v323 = vpop.f32.mrb[0].mxu0
    %v324 = vadd.f32 %v121, %v323
    %v325 = vpop.f32.mrb[0].mxu0
    %v326 = vadd.f32 %v117, %v325
    %v327 = vpop.f32.mrb[0].mxu0
    %v328 = vadd.f32 %v121, %v327
    %329 = vmatprep.mubr.bf16.mxu0 0
    %330 = vmatmul.mubr.bf16.gmra.mrb[0].mxu0 %v76
    %v331 = vpop.f32.mrb[0].mxu0
    %v332 = vadd.f32 %v117, %v331
    %v333 = vpop.f32.mrb[0].mxu0
    %v334 = vadd.f32 %v121, %v333
    %v335 = vpop.f32.mrb[0].mxu0
    %v336 = vadd.f32 %v117, %v335
    %v337 = vpop.f32.mrb[0].mxu0
    %v338 = vadd.f32 %v121, %v337
    %339 = vmatprep.mubr.bf16.mxu0 0
    %340 = vmatmul.mubr.bf16.gmra.mrb[0].mxu0 %v77
    %v341 = vpop.f32.mrb[0].mxu0
    %v342 = vadd.f32 %v117, %v341
    %v343 = vpop.f32.mrb[0].mxu0
    %v344 = vadd.f32 %v121, %v343
    %v345 = vpop.f32.mrb[0].mxu0
    %v346 = vadd.f32 %v117, %v345
    %v347 = vpop.f32.mrb[0].mxu0
    %v348 = vadd.f32 %v121, %v347
    %349 = vmatprep.mubr.bf16.mxu0 0
    %350 = vmatmul.mubr.bf16.gmra.mrb[0].mxu0 %v78
    %v351 = vpop.f32.mrb[0].mxu0
    %v352 = vadd.f32 %v117, %v351
    %v353 = vpop.f32.mrb[0].mxu0
    %v354 = vadd.f32 %v121, %v353
    %v355 = vpop.f32.mrb[0].mxu0
    %v356 = vadd.f32 %v117, %v355
    %v357 = vpop.f32.mrb[0].mxu0
    %v358 = vadd.f32 %v121, %v357
    %359 = vmatprep.mubr.bf16.mxu0 0
    %360 = vmatmul.mubr.bf16.gmra.mrb[0].mxu0 %v79
    %v361 = vpop.f32.mrb[0].mxu0
    %v362 = vadd.f32 %v117, %v361
    %v363 = vpop.f32.mrb[0].mxu0
    %v364 = vadd.f32 %v121, %v363
    %v365 = vpop.f32.mrb[0].mxu0
    %v366 = vadd.f32 %v117, %v365
    %v367 = vpop.f32.mrb[0].mxu0
    %v368 = vadd.f32 %v121, %v367
    %369 = vdwg.mxu0
    %370 = vmatprep.subr.bf16.mxu0 0
    %371 = vmatpush1.bf16.msra.mxu0 %v211
    %372 = vmatprep.subr.bf16.mxu0 0
    %373 = vmatpush1.bf16.msra.mxu0 %v214
    %374 = vmatprep.subr.bf16.mxu0 0
    %375 = vmatpush1.bf16.msra.mxu0 %v217
    %376 = vmatprep.subr.bf16.mxu0 0
    %377 = vmatpush1.bf16.msra.mxu0 %v220
    %378 = vmatprep.subr.bf16.mxu0 0
    %379 = vmatpush1.bf16.msra.mxu0 %v223
    %380 = vmatprep.subr.bf16.mxu0 0
    %381 = vmatpush1.bf16.msra.mxu0 %v226
    %382 = vmatprep.subr.bf16.mxu0 0
    %383 = vmatpush1.bf16.msra.mxu0 %v229
    %384 = vmatprep.subr.bf16.mxu0 0
    %385 = vmatpush1.bf16.msra.mxu0 %v232
    %386 = vmatprep.subr.bf16.mxu0 0
    %387 = vmatpush1.bf16.msra.mxu0 0
    %388 = vmatprep.subr.bf16.mxu0 0
    %389 = vmatpush1.bf16.msra.mxu0 0
    %390 = vmatprep.subr.bf16.mxu0 0
    %391 = vmatpush1.bf16.msra.mxu0 0
    %392 = vmatprep.subr.bf16.mxu0 0
    %393 = vmatpush1.bf16.msra.mxu0 0
    %394 = vmatprep.subr.bf16.mxu0 0
    %395 = vmatpush1.bf16.msra.mxu0 0
    %396 = vmatprep.subr.bf16.mxu0 0
    %397 = vmatpush1.bf16.msra.mxu0 0
    %398 = vmatprep.subr.bf16.mxu0 0
    %399 = vmatpush1.bf16.msra.mxu0 0
    %400 = vmatprep.subr.bf16.mxu0 0
    %401 = vmatpush1.bf16.msra.mxu0 0
    %402 = vmatprep.mubr.bf16.mxu0 0
    %403 = vmatmul.mubr.bf16.gmra.mrb[0].mxu0 %v72
    %v404 = vpop.f32.mrb[0].mxu0
    %v405 = vadd.f32 %v125, %v404
    %v406 = vpop.f32.mrb[0].mxu0
    %v407 = vpop.f32.mrb[0].mxu0
    %v408 = vadd.f32 %v125, %v407
    %v409 = vpop.f32.mrb[0].mxu0
    %410 = vmatprep.mubr.bf16.mxu0 0
    %411 = vmatmul.mubr.bf16.gmra.mrb[0].mxu0 %v73
    %v412 = vpop.f32.mrb[0].mxu0
    %v413 = vadd.f32 %v125, %v412
    %v414 = vpop.f32.mrb[0].mxu0
    %v415 = vpop.f32.mrb[0].mxu0
    %v416 = vadd.f32 %v125, %v415
    %v417 = vpop.f32.mrb[0].mxu0
    %418 = vmatprep.mubr.bf16.mxu0 0
    %419 = vmatmul.mubr.bf16.gmra.mrb[0].mxu0 %v74
    %v420 = vpop.f32.mrb[0].mxu0
    %v421 = vadd.f32 %v125, %v420
    %v422 = vpop.f32.mrb[0].mxu0
    %v423 = vpop.f32.mrb[0].mxu0
    %v424 = vadd.f32 %v125, %v423
    %v425 = vpop.f32.mrb[0].mxu0
    %426 = vmatprep.mubr.bf16.mxu0 0
    %427 = vmatmul.mubr.bf16.gmra.mrb[0].mxu0 %v75
    %v428 = vpop.f32.mrb[0].mxu0
    %v429 = vadd.f32 %v125, %v428
    %v430 = vpop.f32.mrb[0].mxu0
    %v431 = vpop.f32.mrb[0].mxu0
    %v432 = vadd.f32 %v125, %v431
    %v433 = vpop.f32.mrb[0].mxu0
    %434 = vmatprep.mubr.bf16.mxu0 0
    %435 = vmatmul.mubr.bf16.gmra.mrb[0].mxu0 %v76
    %v436 = vpop.f32.mrb[0].mxu0
    %v437 = vadd.f32 %v125, %v436
    %v438 = vpop.f32.mrb[0].mxu0
    %v439 = vpop.f32.mrb[0].mxu0
    %v440 = vadd.f32 %v125, %v439
    %v441 = vpop.f32.mrb[0].mxu0
    %442 = vmatprep.mubr.bf16.mxu0 0
    %443 = vmatmul.mubr.bf16.gmra.mrb[0].mxu0 %v77
    %v444 = vpop.f32.mrb[0].mxu0
    %v445 = vadd.f32 %v125, %v444
    %v446 = vpop.f32.mrb[0].mxu0
    %v447 = vpop.f32.mrb[0].mxu0
    %v448 = vadd.f32 %v125, %v447
    %v449 = vpop.f32.mrb[0].mxu0
    %450 = vmatprep.mubr.bf16.mxu0 0
    %451 = vmatmul.mubr.bf16.gmra.mrb[0].mxu0 %v78
    %v452 = vpop.f32.mrb[0].mxu0
    %v453 = vadd.f32 %v125, %v452
    %v454 = vpop.f32.mrb[0].mxu0
    %v455 = vpop.f32.mrb[0].mxu0
    %v456 = vadd.f32 %v125, %v455
    %v457 = vpop.f32.mrb[0].mxu0
    %458 = vmatprep.mubr.bf16.mxu0 0
    %459 = vmatmul.mubr.bf16.gmra.mrb[0].mxu0 %v79
    %v460 = vpop.f32.mrb[0].mxu0
    %v461 = vadd.f32 %v125, %v460
    %v462 = vpop.f32.mrb[0].mxu0
    %v463 = vpop.f32.mrb[0].mxu0
    %v464 = vadd.f32 %v125, %v463
    %v465 = vpop.f32.mrb[0].mxu0
    %466 = vdwg.mxu0
    %v467 = vpack.c.bf16 %v296, %v292
    %v468 = vpack.c.bf16 %v306, %v302
    %v469 = vpack.c.bf16 %v316, %v312
    %v470 = vpack.c.bf16 %v326, %v322
    %v471 = vpack.c.bf16 %v336, %v332
    %v472 = vpack.c.bf16 %v346, %v342
    %v473 = vpack.c.bf16 %v356, %v352
    %v474 = vpack.c.bf16 %v366, %v362
    %475 = vst [vmem:[#allocation2] sm:$0xff] %v467
    %476 = vst [vmem:[#allocation2 + $0x8] sm:$0xff] %v468
    %477 = vst [vmem:[#allocation2 + $0x10] sm:$0xff] %v469
    %478 = vst [vmem:[#allocation2 + $0x18] sm:$0xff] %v470
    %479 = vst [vmem:[#allocation2 + $0x20] sm:$0xff] %v471
    %480 = vst [vmem:[#allocation2 + $0x28] sm:$0xff] %v472
    %481 = vst [vmem:[#allocation2 + $0x30] sm:$0xff] %v473
    %482 = vst [vmem:[#allocation2 + $0x38] sm:$0xff] %v474
    %v483 = vpack.c.bf16 %v298, %v294
    %v484 = vpack.c.bf16 %v308, %v304
    %v485 = vpack.c.bf16 %v318, %v314
    %v486 = vpack.c.bf16 %v328, %v324
    %v487 = vpack.c.bf16 %v338, %v334
    %v488 = vpack.c.bf16 %v348, %v344
    %v489 = vpack.c.bf16 %v358, %v354
    %v490 = vpack.c.bf16 %v368, %v364
    %491 = vst [vmem:[#allocation3] sm:$0xff] %v483
    %492 = vst [vmem:[#allocation3 + $0x8] sm:$0xff] %v484
    %493 = vst [vmem:[#allocation3 + $0x10] sm:$0xff] %v485
    %494 = vst [vmem:[#allocation3 + $0x18] sm:$0xff] %v486
    %495 = vst [vmem:[#allocation3 + $0x20] sm:$0xff] %v487
    %496 = vst [vmem:[#allocation3 + $0x28] sm:$0xff] %v488
    %497 = vst [vmem:[#allocation3 + $0x30] sm:$0xff] %v489
    %498 = vst [vmem:[#allocation3 + $0x38] sm:$0xff] %v490
    %499 = vst [vmem:[#allocation4] sm:$0xff] %v405
    %500 = vst [vmem:[#allocation4 + $0x8] sm:$0xff] %v408
    %501 = vst [vmem:[#allocation4 + $0x10] sm:$0xff] %v413
    %502 = vst [vmem:[#allocation4 + $0x18] sm:$0xff] %v416
    %503 = vst [vmem:[#allocation4 + $0x20] sm:$0xff] %v421
    %504 = vst [vmem:[#allocation4 + $0x28] sm:$0xff] %v424
    %505 = vst [vmem:[#allocation4 + $0x30] sm:$0xff] %v429
    %506 = vst [vmem:[#allocation4 + $0x38] sm:$0xff] %v432
    %507 = vst [vmem:[#allocation4 + $0x40] sm:$0xff] %v437
    %508 = vst [vmem:[#allocation4 + $0x48] sm:$0xff] %v440
    %509 = vst [vmem:[#allocation4 + $0x50] sm:$0xff] %v445
    %510 = vst [vmem:[#allocation4 + $0x58] sm:$0xff] %v448
    %511 = vst [vmem:[#allocation4 + $0x60] sm:$0xff] %v453
    %512 = vst [vmem:[#allocation4 + $0x68] sm:$0xff] %v456
    %513 = vst [vmem:[#allocation4 + $0x70] sm:$0xff] %v461
    %514 = vst [vmem:[#allocation4 + $0x78] sm:$0xff] %v464
  $region57: #{residual_gated_gcn_layer.1} parent=0 // pred_fallthru
    _
  %v515 = vld [vmem:[%s2] sm:$0xff]
  %v516 = vld [vmem:[%s2 + $0x8] sm:$0xff]
  %v517 = vld [vmem:[%s2 + $0x10] sm:$0xff]
  %v518 = vld [vmem:[%s2 + $0x18] sm:$0xff]
  %v519 = vld [vmem:[%s2 + $0x20] sm:$0xff]
  %v520 = vld [vmem:[%s2 + $0x28] sm:$0xff]
  %v521 = vld [vmem:[%s2 + $0x30] sm:$0xff]
  %v522 = vld [vmem:[%s2 + $0x38] sm:$0xff]
  %v523 = vld [vmem:[%s2 + $0x40] sm:$0xff]
  %v524 = vld [vmem:[%s2 + $0x48] sm:$0xff]
  %v525 = vld [vmem:[%s2 + $0x50] sm:$0xff]
  %v526 = vld [vmem:[%s2 + $0x58] sm:$0xff]
  %v527 = vld [vmem:[%s2 + $0x60] sm:$0xff]
  %v528 = vld [vmem:[%s2 + $0x68] sm:$0xff]
  %v529 = vld [vmem:[%s2 + $0x70] sm:$0xff]
  %v530 = vld [vmem:[%s2 + $0x78] sm:$0xff]
  %v531 = vld [vmem:[%s3] sm:$0xff]
  %v532 = vld [vmem:[%s3 + $0x8] sm:$0xff]
  %v533 = vld [vmem:[%s3 + $0x10] sm:$0xff]
  %v534 = vld [vmem:[%s3 + $0x18] sm:$0xff]
  %v535 = vld [vmem:[%s3 + $0x20] sm:$0xff]
  %v536 = vld [vmem:[%s3 + $0x28] sm:$0xff]
  %v537 = vld [vmem:[%s3 + $0x30] sm:$0xff]
  %v538 = vld [vmem:[%s3 + $0x38] sm:$0xff]
  %v539 = vld [vmem:[%s3 + $0x40] sm:$0xff]
  %v540 = vld [vmem:[%s3 + $0x48] sm:$0xff]
  %v541 = vld [vmem:[%s3 + $0x50] sm:$0xff]
  %v542 = vld [vmem:[%s3 + $0x58] sm:$0xff]
  %v543 = vld [vmem:[%s3 + $0x60] sm:$0xff]
  %v544 = vld [vmem:[%s3 + $0x68] sm:$0xff]
  %v545 = vld [vmem:[%s3 + $0x70] sm:$0xff]
  %v546 = vld [vmem:[%s3 + $0x78] sm:$0xff]
  %v547 = vld [vmem:[%s4] sm:$0x1]
  %548 = vset.pattern.permute.xlu0 0
  %549 = vperm.xlu0 %548, %v515
  %v550 = vpop.permute.xlu0 %549
  %551 = vset.pattern.permute.xlu0 0
  %552 = vperm.xlu0 %551, %v516
  %v553 = vpop.permute.xlu0 %552
  %554 = vset.pattern.permute.xlu0 0
  %555 = vperm.xlu0 %554, %v517
  %v556 = vpop.permute.xlu0 %555
  %557 = vset.pattern.permute.xlu0 0
  %558 = vperm.xlu0 %557, %v518
  %v559 = vpop.permute.xlu0 %558
  %560 = vset.pattern.permute.xlu0 0
  %561 = vperm.xlu0 %560, %v519
  %v562 = vpop.permute.xlu0 %561
  %563 = vset.pattern.permute.xlu0 0
  %564 = vperm.xlu0 %563, %v520
  %v565 = vpop.permute.xlu0 %564
  %566 = vset.pattern.permute.xlu0 0
  %567 = vperm.xlu0 %566, %v521
  %v568 = vpop.permute.xlu0 %567
  %569 = vset.pattern.permute.xlu0 0
  %570 = vperm.xlu0 %569, %v522
  %v571 = vpop.permute.xlu0 %570
  %572 = vset.pattern.permute.xlu0 0
  %573 = vperm.xlu0 %572, %v523
  %v574 = vpop.permute.xlu0 %573
  %575 = vset.pattern.permute.xlu0 0
  %576 = vperm.xlu0 %575, %v524
  %v577 = vpop.permute.xlu0 %576
  %578 = vset.pattern.permute.xlu0 0
  %579 = vperm.xlu0 %578, %v525
  %v580 = vpop.permute.xlu0 %579
  %581 = vset.pattern.permute.xlu0 0
  %582 = vperm.xlu0 %581, %v526
  %v583 = vpop.permute.xlu0 %582
  %584 = vset.pattern.permute.xlu0 0
  %585 = vperm.xlu0 %584, %v527
  %v586 = vpop.permute.xlu0 %585
  %587 = vset.pattern.permute.xlu0 0
  %588 = vperm.xlu0 %587, %v528
  %v589 = vpop.permute.xlu0 %588
  %590 = vset.pattern.permute.xlu0 0
  %591 = vperm.xlu0 %590, %v529
  %v592 = vpop.permute.xlu0 %591
  %593 = vset.pattern.permute.xlu0 0
  %594 = vperm.xlu0 %593, %v530
  %v595 = vpop.permute.xlu0 %594
  %vm596 = vcmp.eq.s32.totalorder %v48, %v550
  %vm597 = vcmp.eq.s32.totalorder %v48, %v553
  %vm598 = vcmp.eq.s32.totalorder %v48, %v556
  %vm599 = vcmp.eq.s32.totalorder %v48, %v559
  %vm600 = vcmp.eq.s32.totalorder %v48, %v562
  %vm601 = vcmp.eq.s32.totalorder %v48, %v565
  %vm602 = vcmp.eq.s32.totalorder %v48, %v568
  %vm603 = vcmp.eq.s32.totalorder %v48, %v571
  %vm604 = vcmp.eq.s32.totalorder %v48, %v574
  %vm605 = vcmp.eq.s32.totalorder %v48, %v577
  %vm606 = vcmp.eq.s32.totalorder %v48, %v580
  %vm607 = vcmp.eq.s32.totalorder %v48, %v583
  %vm608 = vcmp.eq.s32.totalorder %v48, %v586
  %vm609 = vcmp.eq.s32.totalorder %v48, %v589
  %vm610 = vcmp.eq.s32.totalorder %v48, %v592
  %vm611 = vcmp.eq.s32.totalorder %v48, %v595
  %v612 = vsel %vm596, 1, 0
  %v613 = vsel %vm597, 1, 0
  %v614 = vsel %vm598, 1, 0
  %v615 = vsel %vm599, 1, 0
  %v616 = vsel %vm600, 1, 0
  %v617 = vsel %vm601, 1, 0
  %v618 = vsel %vm602, 1, 0
  %v619 = vsel %vm603, 1, 0
  %v620 = vsel %vm604, 1, 0
  %v621 = vsel %vm605, 1, 0
  %v622 = vsel %vm606, 1, 0
  %v623 = vsel %vm607, 1, 0
  %v624 = vsel %vm608, 1, 0
  %v625 = vsel %vm609, 1, 0
  %v626 = vsel %vm610, 1, 0
  %v627 = vsel %vm611, 1, 0
  %v628 = vcvt.s32.f32 %v612
  %v629 = vcvt.s32.f32 %v613
  %v630 = vcvt.s32.f32 %v614
  %v631 = vcvt.s32.f32 %v615
  %v632 = vcvt.s32.f32 %v616
  %v633 = vcvt.s32.f32 %v617
  %v634 = vcvt.s32.f32 %v618
  %v635 = vcvt.s32.f32 %v619
  %v636 = vcvt.s32.f32 %v620
  %v637 = vcvt.s32.f32 %v621
  %v638 = vcvt.s32.f32 %v622
  %v639 = vcvt.s32.f32 %v623
  %v640 = vcvt.s32.f32 %v624
  %v641 = vcvt.s32.f32 %v625
  %v642 = vcvt.s32.f32 %v626
  %v643 = vcvt.s32.f32 %v627
  %v644 = vpack.c.bf16 %v629, %v628
  %v645 = vpack.c.bf16 %v631, %v630
  %v646 = vpack.c.bf16 %v633, %v632
  %v647 = vpack.c.bf16 %v635, %v634
  %v648 = vpack.c.bf16 %v637, %v636
  %v649 = vpack.c.bf16 %v639, %v638
  %v650 = vpack.c.bf16 %v641, %v640
  %v651 = vpack.c.bf16 %v643, %v642
  %652 = vset.pattern.permute.xlu0 0
  %653 = vperm.xlu0 %652, %v531
  %v654 = vpop.permute.xlu0 %653
  %655 = vset.pattern.permute.xlu0 0
  %656 = vperm.xlu0 %655, %v532
  %v657 = vpop.permute.xlu0 %656
  %658 = vset.pattern.permute.xlu0 0
  %659 = vperm.xlu0 %658, %v533
  %v660 = vpop.permute.xlu0 %659
  %661 = vset.pattern.permute.xlu0 0
  %662 = vperm.xlu0 %661, %v534
  %v663 = vpop.permute.xlu0 %662
  %664 = vset.pattern.permute.xlu0 0
  %665 = vperm.xlu0 %664, %v535
  %v666 = vpop.permute.xlu0 %665
  %667 = vset.pattern.permute.xlu0 0
  %668 = vperm.xlu0 %667, %v536
  %v669 = vpop.permute.xlu0 %668
  %670 = vset.pattern.permute.xlu0 0
  %671 = vperm.xlu0 %670, %v537
  %v672 = vpop.permute.xlu0 %671
  %673 = vset.pattern.permute.xlu0 0
  %674 = vperm.xlu0 %673, %v538
  %v675 = vpop.permute.xlu0 %674
  %676 = vset.pattern.permute.xlu0 0
  %677 = vperm.xlu0 %676, %v539
  %v678 = vpop.permute.xlu0 %677
  %679 = vset.pattern.permute.xlu0 0
  %680 = vperm.xlu0 %679, %v540
  %v681 = vpop.permute.xlu0 %680
  %682 = vset.pattern.permute.xlu0 0
  %683 = vperm.xlu0 %682, %v541
  %v684 = vpop.permute.xlu0 %683
  %685 = vset.pattern.permute.xlu0 0
  %686 = vperm.xlu0 %685, %v542
  %v687 = vpop.permute.xlu0 %686
  %688 = vset.pattern.permute.xlu0 0
  %689 = vperm.xlu0 %688, %v543
  %v690 = vpop.permute.xlu0 %689
  %691 = vset.pattern.permute.xlu0 0
  %692 = vperm.xlu0 %691, %v544
  %v693 = vpop.permute.xlu0 %692
  %694 = vset.pattern.permute.xlu0 0
  %695 = vperm.xlu0 %694, %v545
  %v696 = vpop.permute.xlu0 %695
  %697 = vset.pattern.permute.xlu0 0
  %698 = vperm.xlu0 %697, %v546
  %v699 = vpop.permute.xlu0 %698
  %vm700 = vcmp.eq.s32.totalorder %v48, %v654
  %vm701 = vcmp.eq.s32.totalorder %v48, %v657
  %vm702 = vcmp.eq.s32.totalorder %v48, %v660
  %vm703 = vcmp.eq.s32.totalorder %v48, %v663
  %vm704 = vcmp.eq.s32.totalorder %v48, %v666
  %vm705 = vcmp.eq.s32.totalorder %v48, %v669
  %vm706 = vcmp.eq.s32.totalorder %v48, %v672
  %vm707 = vcmp.eq.s32.totalorder %v48, %v675
  %vm708 = vcmp.eq.s32.totalorder %v48, %v678
  %vm709 = vcmp.eq.s32.totalorder %v48, %v681
  %vm710 = vcmp.eq.s32.totalorder %v48, %v684
  %vm711 = vcmp.eq.s32.totalorder %v48, %v687
  %vm712 = vcmp.eq.s32.totalorder %v48, %v690
  %vm713 = vcmp.eq.s32.totalorder %v48, %v693
  %vm714 = vcmp.eq.s32.totalorder %v48, %v696
  %vm715 = vcmp.eq.s32.totalorder %v48, %v699
  %v716 = vsel %vm700, 1, 0
  %v717 = vsel %vm701, 1, 0
  %v718 = vsel %vm702, 1, 0
  %v719 = vsel %vm703, 1, 0
  %v720 = vsel %vm704, 1, 0
  %v721 = vsel %vm705, 1, 0
  %v722 = vsel %vm706, 1, 0
  %v723 = vsel %vm707, 1, 0
  %v724 = vsel %vm708, 1, 0
  %v725 = vsel %vm709, 1, 0
  %v726 = vsel %vm710, 1, 0
  %v727 = vsel %vm711, 1, 0
  %v728 = vsel %vm712, 1, 0
  %v729 = vsel %vm713, 1, 0
  %v730 = vsel %vm714, 1, 0
  %v731 = vsel %vm715, 1, 0
  %v732 = vcvt.s32.f32 %v716
  %v733 = vcvt.s32.f32 %v717
  %v734 = vcvt.s32.f32 %v718
  %v735 = vcvt.s32.f32 %v719
  %v736 = vcvt.s32.f32 %v720
  %v737 = vcvt.s32.f32 %v721
  %v738 = vcvt.s32.f32 %v722
  %v739 = vcvt.s32.f32 %v723
  %v740 = vcvt.s32.f32 %v724
  %v741 = vcvt.s32.f32 %v725
  %v742 = vcvt.s32.f32 %v726
  %v743 = vcvt.s32.f32 %v727
  %v744 = vcvt.s32.f32 %v728
  %v745 = vcvt.s32.f32 %v729
  %v746 = vcvt.s32.f32 %v730
  %v747 = vcvt.s32.f32 %v731
  %v748 = vpack.c.bf16 %v733, %v732
  %v749 = vpack.c.bf16 %v735, %v734
  %v750 = vpack.c.bf16 %v737, %v736
  %v751 = vpack.c.bf16 %v739, %v738
  %v752 = vpack.c.bf16 %v741, %v740
  %v753 = vpack.c.bf16 %v743, %v742
  %v754 = vpack.c.bf16 %v745, %v744
  %v755 = vpack.c.bf16 %v747, %v746
  %v756 = vlaneseq
  %v757 = vshrl.u32 %v756, 7
  %v758 = vadd.s32 %v757, 8
  %v759 = vadd.s32 %v757, 16
  %v760 = vadd.s32 %v757, 24
  %v761 = vadd.s32 %v757, 32
  %v762 = vadd.s32 %v757, 40
  %v763 = vadd.s32 %v757, 48
  %v764 = vadd.s32 %v757, 56
  %v765 = vadd.s32 %v757, 64
  %v766 = vadd.s32 %v757, 72
  %v767 = vadd.s32 %v757, 80
  %v768 = vadd.s32 %v757, 88
  %v769 = vadd.s32 %v757, 96
  %v770 = vadd.s32 %v757, 104
  %v771 = vadd.s32 %v757, 112
  %v772 = vadd.s32 %v757, 120
  %v773 = vlaneseq
  %v774 = vshrl.u32 %v773, 7
  %v775 = vsub.s32 0, %v774
  %v776 = vrot.slane %v547, %v775
  %vm777 = vcmp.eq.s32.totalorder %v757, %v776
  %vm778 = vcmp.eq.s32.totalorder %v758, %v776
  %vm779 = vcmp.eq.s32.totalorder %v759, %v776
  %vm780 = vcmp.eq.s32.totalorder %v760, %v776
  %vm781 = vcmp.eq.s32.totalorder %v761, %v776
  %vm782 = vcmp.eq.s32.totalorder %v762, %v776
  %vm783 = vcmp.eq.s32.totalorder %v763, %v776
  %vm784 = vcmp.eq.s32.totalorder %v764, %v776
  %vm785 = vcmp.eq.s32.totalorder %v765, %v776
  %vm786 = vcmp.eq.s32.totalorder %v766, %v776
  %vm787 = vcmp.eq.s32.totalorder %v767, %v776
  %vm788 = vcmp.eq.s32.totalorder %v768, %v776
  %vm789 = vcmp.eq.s32.totalorder %v769, %v776
  %vm790 = vcmp.eq.s32.totalorder %v770, %v776
  %vm791 = vcmp.eq.s32.totalorder %v771, %v776
  %vm792 = vcmp.eq.s32.totalorder %v772, %v776
  %v793 = vsel %vm777, 1, 0
  %v794 = vsel %vm778, 1, 0
  %v795 = vsel %vm779, 1, 0
  %v796 = vsel %vm780, 1, 0
  %v797 = vsel %vm781, 1, 0
  %v798 = vsel %vm782, 1, 0
  %v799 = vsel %vm783, 1, 0
  %v800 = vsel %vm784, 1, 0
  %v801 = vsel %vm785, 1, 0
  %v802 = vsel %vm786, 1, 0
  %v803 = vsel %vm787, 1, 0
  %v804 = vsel %vm788, 1, 0
  %v805 = vsel %vm789, 1, 0
  %v806 = vsel %vm790, 1, 0
  %v807 = vsel %vm791, 1, 0
  %v808 = vsel %vm792, 1, 0
  %v809 = vcvt.s32.f32 %v793
  %v810 = vcvt.s32.f32 %v794
  %v811 = vcvt.s32.f32 %v795
  %v812 = vcvt.s32.f32 %v796
  %v813 = vcvt.s32.f32 %v797
  %v814 = vcvt.s32.f32 %v798
  %v815 = vcvt.s32.f32 %v799
  %v816 = vcvt.s32.f32 %v800
  %v817 = vcvt.s32.f32 %v801
  %v818 = vcvt.s32.f32 %v802
  %v819 = vcvt.s32.f32 %v803
  %v820 = vcvt.s32.f32 %v804
  %v821 = vcvt.s32.f32 %v805
  %v822 = vcvt.s32.f32 %v806
  %v823 = vcvt.s32.f32 %v807
  %v824 = vcvt.s32.f32 %v808
  %v825 = vpack.c.bf16 %v810, %v809
  %v826 = vpack.c.bf16 %v812, %v811
  %v827 = vpack.c.bf16 %v814, %v813
  %v828 = vpack.c.bf16 %v816, %v815
  %v829 = vpack.c.bf16 %v818, %v817
  %v830 = vpack.c.bf16 %v820, %v819
  %v831 = vpack.c.bf16 %v822, %v821
  %v832 = vpack.c.bf16 %v824, %v823
  %v833 = vld [vmem:[%s0] sm:$0xff]
  %v834 = vld [vmem:[%s0 + $0x8] sm:$0xff]
  %v835 = vld [vmem:[%s0 + $0x10] sm:$0xff]
  %v836 = vld [vmem:[%s0 + $0x18] sm:$0xff]
  %v837 = vld [vmem:[%s0 + $0x20] sm:$0xff]
  %v838 = vld [vmem:[%s0 + $0x28] sm:$0xff]
  %v839 = vld [vmem:[%s0 + $0x30] sm:$0xff]
  %v840 = vld [vmem:[%s0 + $0x38] sm:$0xff]
  %v841 = vld [vmem:[%s0 + $0x40] sm:$0xff]
  %v842 = vld [vmem:[%s0 + $0x48] sm:$0xff]
  %v843 = vld [vmem:[%s0 + $0x50] sm:$0xff]
  %v844 = vld [vmem:[%s0 + $0x58] sm:$0xff]
  %v845 = vld [vmem:[%s0 + $0x60] sm:$0xff]
  %v846 = vld [vmem:[%s0 + $0x68] sm:$0xff]
  %v847 = vld [vmem:[%s0 + $0x70] sm:$0xff]
  %v848 = vld [vmem:[%s0 + $0x78] sm:$0xff]
  %v849 = vpack.c.bf16 %v834, %v833
  %v850 = vpack.c.bf16 %v836, %v835
  %v851 = vpack.c.bf16 %v838, %v837
  %v852 = vpack.c.bf16 %v840, %v839
  %v853 = vpack.c.bf16 %v842, %v841
  %v854 = vpack.c.bf16 %v844, %v843
  %v855 = vpack.c.bf16 %v846, %v845
  %v856 = vpack.c.bf16 %v848, %v847
  %v857 = vld [vmem:[%s5] sm:$0xf]
  %v858 = vld [vmem:[%s5 + $0x4] sm:$0xf]
  %v859 = vld [vmem:[%s5 + $0x8] sm:$0xf]
  %v860 = vld [vmem:[%s5 + $0xc] sm:$0xf]
  %v861 = vld [vmem:[%s5 + $0x10] sm:$0xf]
  %v862 = vld [vmem:[%s5 + $0x14] sm:$0xf]
  %v863 = vld [vmem:[%s5 + $0x18] sm:$0xf]
  %v864 = vld [vmem:[%s5 + $0x1c] sm:$0xf]
  %v865 = vld [vmem:[%s5 + $0x20] sm:$0xf]
  %v866 = vld [vmem:[%s5 + $0x24] sm:$0xf]
  %v867 = vld [vmem:[%s5 + $0x28] sm:$0xf]
  %v868 = vld [vmem:[%s5 + $0x2c] sm:$0xf]
  %v869 = vld [vmem:[%s5 + $0x30] sm:$0xf]
  %v870 = vld [vmem:[%s5 + $0x34] sm:$0xf]
  %v871 = vld [vmem:[%s5 + $0x38] sm:$0xf]
  %v872 = vld [vmem:[%s5 + $0x3c] sm:$0xf]
  %v873 = vld [vmem:[%s6] sm:$0x1]
  %v875 = vlaneseq
  %v876 = vshrl.u32 %v875, 7
  %v877 = vsub.s32 0, %v876
  %v878 = vrot.slane %v873, %v877
  %v896 = vunpack.c.l.b16 %v857
  %v897 = vunpack.c.l.b16 %v858
  %v898 = vunpack.c.l.b16 %v859
  %v899 = vunpack.c.l.b16 %v860
  %v900 = vunpack.c.l.b16 %v861
  %v901 = vunpack.c.l.b16 %v862
  %v902 = vunpack.c.l.b16 %v863
  %v903 = vunpack.c.l.b16 %v864
  %v904 = vunpack.c.l.b16 %v865
  %v905 = vunpack.c.l.b16 %v866
  %v906 = vunpack.c.l.b16 %v867
  %v907 = vunpack.c.l.b16 %v868
  %v908 = vunpack.c.l.b16 %v869
  %v909 = vunpack.c.l.b16 %v870
  %v910 = vunpack.c.l.b16 %v871
  %v911 = vunpack.c.l.b16 %v872
  %v912 = vpack.c.b16 %v897, %v896
  %v913 = vpack.c.b16 %v899, %v898
  %v914 = vpack.c.b16 %v901, %v900
  %v915 = vpack.c.b16 %v903, %v902
  %v916 = vpack.c.b16 %v905, %v904
  %v917 = vpack.c.b16 %v907, %v906
  %v918 = vpack.c.b16 %v909, %v908
  %v919 = vpack.c.b16 %v911, %v910
  %928 = vmatprep.subr.bf16.mxu0 0
  %929 = vmatpush1.bf16.msra.mxu0 %v912
  %930 = vmatprep.subr.bf16.mxu0 0
  %931 = vmatpush1.bf16.msra.mxu0 %v913
  %932 = vmatprep.subr.bf16.mxu0 0
  %933 = vmatpush1.bf16.msra.mxu0 %v914
  %934 = vmatprep.subr.bf16.mxu0 0
  %935 = vmatpush1.bf16.msra.mxu0 %v915
  %936 = vmatprep.subr.bf16.mxu0 0
  %937 = vmatpush1.bf16.msra.mxu0 %v916
  %938 = vmatprep.subr.bf16.mxu0 0
  %939 = vmatpush1.bf16.msra.mxu0 %v917
  %940 = vmatprep.subr.bf16.mxu0 0
  %941 = vmatpush1.bf16.msra.mxu0 %v918
  %942 = vmatprep.subr.bf16.mxu0 0
  %943 = vmatpush1.bf16.msra.mxu0 %v919
  %944 = vmatprep.subr.bf16.mxu0 0
  %945 = vmatpush1.bf16.msra.mxu0 0
  %946 = vmatprep.subr.bf16.mxu0 0
  %947 = vmatpush1.bf16.msra.mxu0 0
  %948 = vmatprep.subr.bf16.mxu0 0
  %949 = vmatpush1.bf16.msra.mxu0 0
  %950 = vmatprep.subr.bf16.mxu0 0
  %951 = vmatpush1.bf16.msra.mxu0 0
  %952 = vmatprep.subr.bf16.mxu0 0
  %953 = vmatpush1.bf16.msra.mxu0 0
  %954 = vmatprep.subr.bf16.mxu0 0
  %955 = vmatpush1.bf16.msra.mxu0 0
  %956 = vmatprep.subr.bf16.mxu0 0
  %957 = vmatpush1.bf16.msra.mxu0 0
  %958 = vmatprep.subr.bf16.mxu0 0
  %959 = vmatpush1.bf16.msra.mxu0 0
  %960 = vmatprep.mubr.bf16.mxu0 0
  %961 = vmatmul.mubr.bf16.gmra.mrb[0].mxu0 %v849
  %v962 = vpop.f32.mrb[0].mxu0
  %v963 = vadd.f32 %v878, %v962
  %v964 = vpop.f32.mrb[0].mxu0
  %v965 = vpop.f32.mrb[0].mxu0
  %v966 = vadd.f32 %v878, %v965
  %v967 = vpop.f32.mrb[0].mxu0
  %968 = vmatprep.mubr.bf16.mxu0 0
  %969 = vmatmul.mubr.bf16.gmra.mrb[0].mxu0 %v850
  %v970 = vpop.f32.mrb[0].mxu0
  %v971 = vadd.f32 %v878, %v970
  %v972 = vpop.f32.mrb[0].mxu0
  %v973 = vpop.f32.mrb[0].mxu0
  %v974 = vadd.f32 %v878, %v973
  %v975 = vpop.f32.mrb[0].mxu0
  %976 = vmatprep.mubr.bf16.mxu0 0
  %977 = vmatmul.mubr.bf16.gmra.mrb[0].mxu0 %v851
  %v978 = vpop.f32.mrb[0].mxu0
  %v979 = vadd.f32 %v878, %v978
  %v980 = vpop.f32.mrb[0].mxu0
  %v981 = vpop.f32.mrb[0].mxu0
  %v982 = vadd.f32 %v878, %v981
  %v983 = vpop.f32.mrb[0].mxu0
  %984 = vmatprep.mubr.bf16.mxu0 0
  %985 = vmatmul.mubr.bf16.gmra.mrb[0].mxu0 %v852
  %v986 = vpop.f32.mrb[0].mxu0
  %v987 = vadd.f32 %v878, %v986
  %v988 = vpop.f32.mrb[0].mxu0
  %v989 = vpop.f32.mrb[0].mxu0
  %v990 = vadd.f32 %v878, %v989
  %v991 = vpop.f32.mrb[0].mxu0
  %992 = vmatprep.mubr.bf16.mxu0 0
  %993 = vmatmul.mubr.bf16.gmra.mrb[0].mxu0 %v853
  %v994 = vpop.f32.mrb[0].mxu0
  %v995 = vadd.f32 %v878, %v994
  %v996 = vpop.f32.mrb[0].mxu0
  %v997 = vpop.f32.mrb[0].mxu0
  %v998 = vadd.f32 %v878, %v997
  %v999 = vpop.f32.mrb[0].mxu0
  %1000 = vmatprep.mubr.bf16.mxu0 0
  %1001 = vmatmul.mubr.bf16.gmra.mrb[0].mxu0 %v854
  %v1002 = vpop.f32.mrb[0].mxu0
  %v1003 = vadd.f32 %v878, %v1002
  %v1004 = vpop.f32.mrb[0].mxu0
  %v1005 = vpop.f32.mrb[0].mxu0
  %v1006 = vadd.f32 %v878, %v1005
  %v1007 = vpop.f32.mrb[0].mxu0
  %1008 = vmatprep.mubr.bf16.mxu0 0
  %1009 = vmatmul.mubr.bf16.gmra.mrb[0].mxu0 %v855
  %v1010 = vpop.f32.mrb[0].mxu0
  %v1011 = vadd.f32 %v878, %v1010
  %v1012 = vpop.f32.mrb[0].mxu0
  %v1013 = vpop.f32.mrb[0].mxu0
  %v1014 = vadd.f32 %v878, %v1013
  %v1015 = vpop.f32.mrb[0].mxu0
  %1016 = vmatprep.mubr.bf16.mxu0 0
  %1017 = vmatmul.mubr.bf16.gmra.mrb[0].mxu0 %v856
  %v1018 = vpop.f32.mrb[0].mxu0
  %v1019 = vadd.f32 %v878, %v1018
  %v1020 = vpop.f32.mrb[0].mxu0
  %v1021 = vpop.f32.mrb[0].mxu0
  %v1022 = vadd.f32 %v878, %v1021
  %v1023 = vpop.f32.mrb[0].mxu0
  %1024 = vdwg.mxu0
  %v1025 = vadd.bf16 %v644, %v748
  %v1026 = vadd.bf16 %v645, %v749
  %v1027 = vadd.bf16 %v646, %v750
  %v1028 = vadd.bf16 %v647, %v751
  %v1029 = vadd.bf16 %v648, %v752
  %v1030 = vadd.bf16 %v649, %v753
  %v1031 = vadd.bf16 %v650, %v754
  %v1032 = vadd.bf16 %v651, %v755
  %v1033 = vld [vmem:[#allocation2] sm:$0xff]
  %v1034 = vld [vmem:[#allocation2 + $0x8] sm:$0xff]
  %v1035 = vld [vmem:[#allocation2 + $0x10] sm:$0xff]
  %v1036 = vld [vmem:[#allocation2 + $0x18] sm:$0xff]
  %v1037 = vld [vmem:[#allocation2 + $0x20] sm:$0xff]
  %v1038 = vld [vmem:[#allocation2 + $0x28] sm:$0xff]
  %v1039 = vld [vmem:[#allocation2 + $0x30] sm:$0xff]
  %v1040 = vld [vmem:[#allocation2 + $0x38] sm:$0xff]
  %1041 = vmatprep.subr.bf16.mxu0 0
  %1042 = vmatpush1.bf16.msra.mxu0 %v1033
  %1043 = vmatprep.subr.bf16.mxu0 0
  %1044 = vmatpush1.bf16.msra.mxu0 %v1034
  %1045 = vmatprep.subr.bf16.mxu0 0
  %1046 = vmatpush1.bf16.msra.mxu0 %v1035
  %1047 = vmatprep.subr.bf16.mxu0 0
  %1048 = vmatpush1.bf16.msra.mxu0 %v1036
  %1049 = vmatprep.subr.bf16.mxu0 0
  %1050 = vmatpush1.bf16.msra.mxu0 %v1037
  %1051 = vmatprep.subr.bf16.mxu0 0
  %1052 = vmatpush1.bf16.msra.mxu0 %v1038
  %1053 = vmatprep.subr.bf16.mxu0 0
  %1054 = vmatpush1.bf16.msra.mxu0 %v1039
  %1055 = vmatprep.subr.bf16.mxu0 0
  %1056 = vmatpush1.bf16.msra.mxu0 %v1040
  %1057 = vmatprep.subr.bf16.mxu0 0
  %1058 = vmatpush1.bf16.msra.mxu0 0
  %1059 = vmatprep.subr.bf16.mxu0 0
  %1060 = vmatpush1.bf16.msra.mxu0 0
  %1061 = vmatprep.subr.bf16.mxu0 0
  %1062 = vmatpush1.bf16.msra.mxu0 0
  %1063 = vmatprep.subr.bf16.mxu0 0
  %1064 = vmatpush1.bf16.msra.mxu0 0
  %1065 = vmatprep.subr.bf16.mxu0 0
  %1066 = vmatpush1.bf16.msra.mxu0 0
  %1067 = vmatprep.subr.bf16.mxu0 0
  %1068 = vmatpush1.bf16.msra.mxu0 0
  %1069 = vmatprep.subr.bf16.mxu0 0
  %1070 = vmatpush1.bf16.msra.mxu0 0
  %1071 = vmatprep.subr.bf16.mxu0 0
  %1072 = vmatpush1.bf16.msra.mxu0 0
  %1073 = vmatprep.mubr.bf16.mxu0 0
  %1074 = vmatmul.mubr.bf16.gmra.mrb[0].mxu0 %v1025
  %v1075 = vpop.f32.mrb[0].mxu0
  %v1076 = vadd.f32 0.0, %v1075
  %v1077 = vpop.f32.mrb[0].mxu0
  %v1078 = vpop.f32.mrb[0].mxu0
  %v1079 = vadd.f32 0.0, %v1078
  %v1080 = vpop.f32.mrb[0].mxu0
  %1081 = vmatprep.mubr.bf16.mxu0 0
  %1082 = vmatmul.mubr.bf16.gmra.mrb[0].mxu0 %v1026
  %v1083 = vpop.f32.mrb[0].mxu0
  %v1084 = vadd.f32 0.0, %v1083
  %v1085 = vpop.f32.mrb[0].mxu0
  %v1086 = vpop.f32.mrb[0].mxu0
  %v1087 = vadd.f32 0.0, %v1086
  %v1088 = vpop.f32.mrb[0].mxu0
  %1089 = vmatprep.mubr.bf16.mxu0 0
  %1090 = vmatmul.mubr.bf16.gmra.mrb[0].mxu0 %v1027
  %v1091 = vpop.f32.mrb[0].mxu0
  %v1092 = vadd.f32 0.0, %v1091
  %v1093 = vpop.f32.mrb[0].mxu0
  %v1094 = vpop.f32.mrb[0].mxu0
  %v1095 = vadd.f32 0.0, %v1094
  %v1096 = vpop.f32.mrb[0].mxu0
  %1097 = vmatprep.mubr.bf16.mxu0 0
  %1098 = vmatmul.mubr.bf16.gmra.mrb[0].mxu0 %v1028
  %v1099 = vpop.f32.mrb[0].mxu0
  %v1100 = vadd.f32 0.0, %v1099
  %v1101 = vpop.f32.mrb[0].mxu0
  %v1102 = vpop.f32.mrb[0].mxu0
  %v1103 = vadd.f32 0.0, %v1102
  %v1104 = vpop.f32.mrb[0].mxu0
  %1105 = vmatprep.mubr.bf16.mxu0 0
  %1106 = vmatmul.mubr.bf16.gmra.mrb[0].mxu0 %v1029
  %v1107 = vpop.f32.mrb[0].mxu0
  %v1108 = vadd.f32 0.0, %v1107
  %v1109 = vpop.f32.mrb[0].mxu0
  %v1110 = vpop.f32.mrb[0].mxu0
  %v1111 = vadd.f32 0.0, %v1110
  %v1112 = vpop.f32.mrb[0].mxu0
  %1113 = vmatprep.mubr.bf16.mxu0 0
  %1114 = vmatmul.mubr.bf16.gmra.mrb[0].mxu0 %v1030
  %v1115 = vpop.f32.mrb[0].mxu0
  %v1116 = vadd.f32 0.0, %v1115
  %v1117 = vpop.f32.mrb[0].mxu0
  %v1118 = vpop.f32.mrb[0].mxu0
  %v1119 = vadd.f32 0.0, %v1118
  %v1120 = vpop.f32.mrb[0].mxu0
  %1121 = vmatprep.mubr.bf16.mxu0 0
  %1122 = vmatmul.mubr.bf16.gmra.mrb[0].mxu0 %v1031
  %v1123 = vpop.f32.mrb[0].mxu0
  %v1124 = vadd.f32 0.0, %v1123
  %v1125 = vpop.f32.mrb[0].mxu0
  %v1126 = vpop.f32.mrb[0].mxu0
  %v1127 = vadd.f32 0.0, %v1126
  %v1128 = vpop.f32.mrb[0].mxu0
  %1129 = vmatprep.mubr.bf16.mxu0 0
  %1130 = vmatmul.mubr.bf16.gmra.mrb[0].mxu0 %v1032
  %v1131 = vpop.f32.mrb[0].mxu0
  %v1132 = vadd.f32 0.0, %v1131
  %v1133 = vpop.f32.mrb[0].mxu0
  %v1134 = vpop.f32.mrb[0].mxu0
  %v1135 = vadd.f32 0.0, %v1134
  %v1136 = vpop.f32.mrb[0].mxu0
  %1137 = vdwg.mxu0
  %v1138 = vadd.f32 %v963, %v1076
  %v1139 = vadd.f32 %v966, %v1079
  %v1140 = vadd.f32 %v971, %v1084
  %v1141 = vadd.f32 %v974, %v1087
  %v1142 = vadd.f32 %v979, %v1092
  %v1143 = vadd.f32 %v982, %v1095
  %v1144 = vadd.f32 %v987, %v1100
  %v1145 = vadd.f32 %v990, %v1103
  %v1146 = vadd.f32 %v995, %v1108
  %v1147 = vadd.f32 %v998, %v1111
  %v1148 = vadd.f32 %v1003, %v1116
  %v1149 = vadd.f32 %v1006, %v1119
  %v1150 = vadd.f32 %v1011, %v1124
  %v1151 = vadd.f32 %v1014, %v1127
  %v1152 = vadd.f32 %v1019, %v1132
  %v1153 = vadd.f32 %v1022, %v1135
  %v1154 = vxor.u32 %v1138, 2147483648
  %v1155 = vxor.u32 %v1139, 2147483648
  %v1156 = vxor.u32 %v1140, 2147483648
  %v1157 = vxor.u32 %v1141, 2147483648
  %v1158 = vxor.u32 %v1142, 2147483648
  %v1159 = vxor.u32 %v1143, 2147483648
  %v1160 = vxor.u32 %v1144, 2147483648
  %v1161 = vxor.u32 %v1145, 2147483648
  %v1162 = vxor.u32 %v1146, 2147483648
  %v1163 = vxor.u32 %v1147, 2147483648
  %v1164 = vxor.u32 %v1148, 2147483648
  %v1165 = vxor.u32 %v1149, 2147483648
  %v1166 = vxor.u32 %v1150, 2147483648
  %v1167 = vxor.u32 %v1151, 2147483648
  %v1168 = vxor.u32 %v1152, 2147483648
  %v1169 = vxor.u32 %v1153, 2147483648
  %v1170 = vmul.f32 %v1154, 1.442695
  %v1171 = vpow.pop %v1170
  %v1172 = vmul.f32 %v1155, 1.442695
  %v1173 = vpow.pop %v1172
  %v1174 = vmul.f32 %v1156, 1.442695
  %v1175 = vpow.pop %v1174
  %v1176 = vmul.f32 %v1157, 1.442695
  %v1177 = vpow.pop %v1176
  %v1178 = vmul.f32 %v1158, 1.442695
  %v1179 = vpow.pop %v1178
  %v1180 = vmul.f32 %v1159, 1.442695
  %v1181 = vpow.pop %v1180
  %v1182 = vmul.f32 %v1160, 1.442695
  %v1183 = vpow.pop %v1182
  %v1184 = vmul.f32 %v1161, 1.442695
  %v1185 = vpow.pop %v1184
  %v1186 = vmul.f32 %v1162, 1.442695
  %v1187 = vpow.pop %v1186
  %v1188 = vmul.f32 %v1163, 1.442695
  %v1189 = vpow.pop %v1188
  %v1190 = vmul.f32 %v1164, 1.442695
  %v1191 = vpow.pop %v1190
  %v1192 = vmul.f32 %v1165, 1.442695
  %v1193 = vpow.pop %v1192
  %v1194 = vmul.f32 %v1166, 1.442695
  %v1195 = vpow.pop %v1194
  %v1196 = vmul.f32 %v1167, 1.442695
  %v1197 = vpow.pop %v1196
  %v1198 = vmul.f32 %v1168, 1.442695
  %v1199 = vpow.pop %v1198
  %v1200 = vmul.f32 %v1169, 1.442695
  %v1201 = vpow.pop %v1200
  %v1202 = vadd.f32 %v1171, 1.0
  %v1203 = vadd.f32 %v1173, 1.0
  %v1204 = vadd.f32 %v1175, 1.0
  %v1205 = vadd.f32 %v1177, 1.0
  %v1206 = vadd.f32 %v1179, 1.0
  %v1207 = vadd.f32 %v1181, 1.0
  %v1208 = vadd.f32 %v1183, 1.0
  %v1209 = vadd.f32 %v1185, 1.0
  %v1210 = vadd.f32 %v1187, 1.0
  %v1211 = vadd.f32 %v1189, 1.0
  %v1212 = vadd.f32 %v1191, 1.0
  %v1213 = vadd.f32 %v1193, 1.0
  %v1214 = vadd.f32 %v1195, 1.0
  %v1215 = vadd.f32 %v1197, 1.0
  %v1216 = vadd.f32 %v1199, 1.0
  %v1217 = vadd.f32 %v1201, 1.0
  %v1218 = vrcp.pop %v1202
  %v1219 = vmul.f32 1.0, %v1218
  %v1220 = vrcp.pop %v1203
  %v1221 = vmul.f32 1.0, %v1220
  %v1222 = vrcp.pop %v1204
  %v1223 = vmul.f32 1.0, %v1222
  %v1224 = vrcp.pop %v1205
  %v1225 = vmul.f32 1.0, %v1224
  %v1226 = vrcp.pop %v1206
  %v1227 = vmul.f32 1.0, %v1226
  %v1228 = vrcp.pop %v1207
  %v1229 = vmul.f32 1.0, %v1228
  %v1230 = vrcp.pop %v1208
  %v1231 = vmul.f32 1.0, %v1230
  %v1232 = vrcp.pop %v1209
  %v1233 = vmul.f32 1.0, %v1232
  %v1234 = vrcp.pop %v1210
  %v1235 = vmul.f32 1.0, %v1234
  %v1236 = vrcp.pop %v1211
  %v1237 = vmul.f32 1.0, %v1236
  %v1238 = vrcp.pop %v1212
  %v1239 = vmul.f32 1.0, %v1238
  %v1240 = vrcp.pop %v1213
  %v1241 = vmul.f32 1.0, %v1240
  %v1242 = vrcp.pop %v1214
  %v1243 = vmul.f32 1.0, %v1242
  %v1244 = vrcp.pop %v1215
  %v1245 = vmul.f32 1.0, %v1244
  %v1246 = vrcp.pop %v1216
  %v1247 = vmul.f32 1.0, %v1246
  %v1248 = vrcp.pop %v1217
  %v1249 = vmul.f32 1.0, %v1248
  %v1250 = vld [vmem:[#allocation3] sm:$0xff]
  %v1251 = vld [vmem:[#allocation3 + $0x8] sm:$0xff]
  %v1252 = vld [vmem:[#allocation3 + $0x10] sm:$0xff]
  %v1253 = vld [vmem:[#allocation3 + $0x18] sm:$0xff]
  %v1254 = vld [vmem:[#allocation3 + $0x20] sm:$0xff]
  %v1255 = vld [vmem:[#allocation3 + $0x28] sm:$0xff]
  %v1256 = vld [vmem:[#allocation3 + $0x30] sm:$0xff]
  %v1257 = vld [vmem:[#allocation3 + $0x38] sm:$0xff]
  %1258 = vmatprep.subr.bf16.mxu0 0
  %1259 = vmatpush1.bf16.msra.mxu0 %v1250
  %1260 = vmatprep.subr.bf16.mxu0 0
  %1261 = vmatpush1.bf16.msra.mxu0 %v1251
  %1262 = vmatprep.subr.bf16.mxu0 0
  %1263 = vmatpush1.bf16.msra.mxu0 %v1252
  %1264 = vmatprep.subr.bf16.mxu0 0
  %1265 = vmatpush1.bf16.msra.mxu0 %v1253
  %1266 = vmatprep.subr.bf16.mxu0 0
  %1267 = vmatpush1.bf16.msra.mxu0 %v1254
  %1268 = vmatprep.subr.bf16.mxu0 0
  %1269 = vmatpush1.bf16.msra.mxu0 %v1255
  %1270 = vmatprep.subr.bf16.mxu0 0
  %1271 = vmatpush1.bf16.msra.mxu0 %v1256
  %1272 = vmatprep.subr.bf16.mxu0 0
  %1273 = vmatpush1.bf16.msra.mxu0 %v1257
  %1274 = vmatprep.subr.bf16.mxu0 0
  %1275 = vmatpush1.bf16.msra.mxu0 0
  %1276 = vmatprep.subr.bf16.mxu0 0
  %1277 = vmatpush1.bf16.msra.mxu0 0
  %1278 = vmatprep.subr.bf16.mxu0 0
  %1279 = vmatpush1.bf16.msra.mxu0 0
  %1280 = vmatprep.subr.bf16.mxu0 0
  %1281 = vmatpush1.bf16.msra.mxu0 0
  %1282 = vmatprep.subr.bf16.mxu0 0
  %1283 = vmatpush1.bf16.msra.mxu0 0
  %1284 = vmatprep.subr.bf16.mxu0 0
  %1285 = vmatpush1.bf16.msra.mxu0 0
  %1286 = vmatprep.subr.bf16.mxu0 0
  %1287 = vmatpush1.bf16.msra.mxu0 0
  %1288 = vmatprep.subr.bf16.mxu0 0
  %1289 = vmatpush1.bf16.msra.mxu0 0
  %1290 = vmatprep.mubr.bf16.mxu0 0
  %1291 = vmatmul.mubr.bf16.gmra.mrb[0].mxu0 %v644
  %v1292 = vpop.f32.mrb[0].mxu0
  %v1293 = vadd.f32 0.0, %v1292
  %v1294 = vpop.f32.mrb[0].mxu0
  %v1295 = vpop.f32.mrb[0].mxu0
  %v1296 = vadd.f32 0.0, %v1295
  %v1297 = vpop.f32.mrb[0].mxu0
  %1298 = vmatprep.mubr.bf16.mxu0 0
  %1299 = vmatmul.mubr.bf16.gmra.mrb[0].mxu0 %v645
  %v1300 = vpop.f32.mrb[0].mxu0
  %v1301 = vadd.f32 0.0, %v1300
  %v1302 = vpop.f32.mrb[0].mxu0
  %v1303 = vpop.f32.mrb[0].mxu0
  %v1304 = vadd.f32 0.0, %v1303
  %v1305 = vpop.f32.mrb[0].mxu0
  %1306 = vmatprep.mubr.bf16.mxu0 0
  %1307 = vmatmul.mubr.bf16.gmra.mrb[0].mxu0 %v646
  %v1308 = vpop.f32.mrb[0].mxu0
  %v1309 = vadd.f32 0.0, %v1308
  %v1310 = vpop.f32.mrb[0].mxu0
  %v1311 = vpop.f32.mrb[0].mxu0
  %v1312 = vadd.f32 0.0, %v1311
  %v1313 = vpop.f32.mrb[0].mxu0
  %1314 = vmatprep.mubr.bf16.mxu0 0
  %1315 = vmatmul.mubr.bf16.gmra.mrb[0].mxu0 %v647
  %v1316 = vpop.f32.mrb[0].mxu0
  %v1317 = vadd.f32 0.0, %v1316
  %v1318 = vpop.f32.mrb[0].mxu0
  %v1319 = vpop.f32.mrb[0].mxu0
  %v1320 = vadd.f32 0.0, %v1319
  %v1321 = vpop.f32.mrb[0].mxu0
  %1322 = vmatprep.mubr.bf16.mxu0 0
  %1323 = vmatmul.mubr.bf16.gmra.mrb[0].mxu0 %v648
  %v1324 = vpop.f32.mrb[0].mxu0
  %v1325 = vadd.f32 0.0, %v1324
  %v1326 = vpop.f32.mrb[0].mxu0
  %v1327 = vpop.f32.mrb[0].mxu0
  %v1328 = vadd.f32 0.0, %v1327
  %v1329 = vpop.f32.mrb[0].mxu0
  %1330 = vmatprep.mubr.bf16.mxu0 0
  %1331 = vmatmul.mubr.bf16.gmra.mrb[0].mxu0 %v649
  %v1332 = vpop.f32.mrb[0].mxu0
  %v1333 = vadd.f32 0.0, %v1332
  %v1334 = vpop.f32.mrb[0].mxu0
  %v1335 = vpop.f32.mrb[0].mxu0
  %v1336 = vadd.f32 0.0, %v1335
  %v1337 = vpop.f32.mrb[0].mxu0
  %1338 = vmatprep.mubr.bf16.mxu0 0
  %1339 = vmatmul.mubr.bf16.gmra.mrb[0].mxu0 %v650
  %v1340 = vpop.f32.mrb[0].mxu0
  %v1341 = vadd.f32 0.0, %v1340
  %v1342 = vpop.f32.mrb[0].mxu0
  %v1343 = vpop.f32.mrb[0].mxu0
  %v1344 = vadd.f32 0.0, %v1343
  %v1345 = vpop.f32.mrb[0].mxu0
  %1346 = vmatprep.mubr.bf16.mxu0 0
  %1347 = vmatmul.mubr.bf16.gmra.mrb[0].mxu0 %v651
  %v1348 = vpop.f32.mrb[0].mxu0
  %v1349 = vadd.f32 0.0, %v1348
  %v1350 = vpop.f32.mrb[0].mxu0
  %v1351 = vpop.f32.mrb[0].mxu0
  %v1352 = vadd.f32 0.0, %v1351
  %v1353 = vpop.f32.mrb[0].mxu0
  %1354 = vdwg.mxu0
  %v1355 = vmul.f32 %v1219, %v1293
  %v1356 = vmul.f32 %v1221, %v1296
  %v1357 = vmul.f32 %v1223, %v1301
  %v1358 = vmul.f32 %v1225, %v1304
  %v1359 = vmul.f32 %v1227, %v1309
  %v1360 = vmul.f32 %v1229, %v1312
  %v1361 = vmul.f32 %v1231, %v1317
  %v1362 = vmul.f32 %v1233, %v1320
  %v1363 = vmul.f32 %v1235, %v1325
  %v1364 = vmul.f32 %v1237, %v1328
  %v1365 = vmul.f32 %v1239, %v1333
  %v1366 = vmul.f32 %v1241, %v1336
  %v1367 = vmul.f32 %v1243, %v1341
  %v1368 = vmul.f32 %v1245, %v1344
  %v1369 = vmul.f32 %v1247, %v1349
  %v1370 = vmul.f32 %v1249, %v1352
  %v1371 = vpack.c.bf16 %v1356, %v1355
  %v1372 = vpack.c.bf16 %v1358, %v1357
  %v1373 = vpack.c.bf16 %v1360, %v1359
  %v1374 = vpack.c.bf16 %v1362, %v1361
  %v1375 = vpack.c.bf16 %v1364, %v1363
  %v1376 = vpack.c.bf16 %v1366, %v1365
  %v1377 = vpack.c.bf16 %v1368, %v1367
  %v1378 = vpack.c.bf16 %v1370, %v1369
  %v1379 = vld [vmem:[#allocation4] sm:$0xff]
  %v1380 = vld [vmem:[#allocation4 + $0x8] sm:$0xff]
  %v1381 = vld [vmem:[#allocation4 + $0x10] sm:$0xff]
  %v1382 = vld [vmem:[#allocation4 + $0x18] sm:$0xff]
  %v1383 = vld [vmem:[#allocation4 + $0x20] sm:$0xff]
  %v1384 = vld [vmem:[#allocation4 + $0x28] sm:$0xff]
  %v1385 = vld [vmem:[#allocation4 + $0x30] sm:$0xff]
  %v1386 = vld [vmem:[#allocation4 + $0x38] sm:$0xff]
  %v1387 = vld [vmem:[#allocation4 + $0x40] sm:$0xff]
  %v1388 = vld [vmem:[#allocation4 + $0x48] sm:$0xff]
  %v1389 = vld [vmem:[#allocation4 + $0x50] sm:$0xff]
  %v1390 = vld [vmem:[#allocation4 + $0x58] sm:$0xff]
  %v1391 = vld [vmem:[#allocation4 + $0x60] sm:$0xff]
  %v1392 = vld [vmem:[#allocation4 + $0x68] sm:$0xff]
  %v1393 = vld [vmem:[#allocation4 + $0x70] sm:$0xff]
  %v1394 = vld [vmem:[#allocation4 + $0x78] sm:$0xff]
  %1395 = vmatprep.subr.bf16.mxu0 0
  %1396 = vmatpush1.bf16.msra.mxu0 %v1371
  %1397 = vmatprep.subr.bf16.mxu0 0
  %1398 = vmatpush1.bf16.msra.mxu0 %v1372
  %1399 = vmatprep.subr.bf16.mxu0 0
  %1400 = vmatpush1.bf16.msra.mxu0 %v1373
  %1401 = vmatprep.subr.bf16.mxu0 0
  %1402 = vmatpush1.bf16.msra.mxu0 %v1374
  %1403 = vmatprep.subr.bf16.mxu0 0
  %1404 = vmatpush1.bf16.msra.mxu0 %v1375
  %1405 = vmatprep.subr.bf16.mxu0 0
  %1406 = vmatpush1.bf16.msra.mxu0 %v1376
  %1407 = vmatprep.subr.bf16.mxu0 0
  %1408 = vmatpush1.bf16.msra.mxu0 %v1377
  %1409 = vmatprep.subr.bf16.mxu0 0
  %1410 = vmatpush1.bf16.msra.mxu0 %v1378
  %1411 = vmatprep.subr.bf16.mxu0 0
  %1412 = vmatpush1.bf16.msra.mxu0 0
  %1413 = vmatprep.subr.bf16.mxu0 0
  %1414 = vmatpush1.bf16.msra.mxu0 0
  %1415 = vmatprep.subr.bf16.mxu0 0
  %1416 = vmatpush1.bf16.msra.mxu0 0
  %1417 = vmatprep.subr.bf16.mxu0 0
  %1418 = vmatpush1.bf16.msra.mxu0 0
  %1419 = vmatprep.subr.bf16.mxu0 0
  %1420 = vmatpush1.bf16.msra.mxu0 0
  %1421 = vmatprep.subr.bf16.mxu0 0
  %1422 = vmatpush1.bf16.msra.mxu0 0
  %1423 = vmatprep.subr.bf16.mxu0 0
  %1424 = vmatpush1.bf16.msra.mxu0 0
  %1425 = vmatprep.subr.bf16.mxu0 0
  %1426 = vmatpush1.bf16.msra.mxu0 0
  %1427 = vmatprep.mubr.bf16.mxu0 0
  %1428 = vmatmul.mubr.bf16.gmra.mrb[0].mxu0 %v825
  %v1429 = vpop.f32.mrb[0].mxu0
  %v1430 = vadd.f32 0.0, %v1429
  %v1431 = vpop.f32.mrb[0].mxu0
  %v1432 = vpop.f32.mrb[0].mxu0
  %v1433 = vadd.f32 0.0, %v1432
  %v1434 = vpop.f32.mrb[0].mxu0
  %1435 = vmatprep.mubr.bf16.mxu0 0
  %1436 = vmatmul.mubr.bf16.gmra.mrb[0].mxu0 %v826
  %v1437 = vpop.f32.mrb[0].mxu0
  %v1438 = vadd.f32 0.0, %v1437
  %v1439 = vpop.f32.mrb[0].mxu0
  %v1440 = vpop.f32.mrb[0].mxu0
  %v1441 = vadd.f32 0.0, %v1440
  %v1442 = vpop.f32.mrb[0].mxu0
  %1443 = vmatprep.mubr.bf16.mxu0 0
  %1444 = vmatmul.mubr.bf16.gmra.mrb[0].mxu0 %v827
  %v1445 = vpop.f32.mrb[0].mxu0
  %v1446 = vadd.f32 0.0, %v1445
  %v1447 = vpop.f32.mrb[0].mxu0
  %v1448 = vpop.f32.mrb[0].mxu0
  %v1449 = vadd.f32 0.0, %v1448
  %v1450 = vpop.f32.mrb[0].mxu0
  %1451 = vmatprep.mubr.bf16.mxu0 0
  %1452 = vmatmul.mubr.bf16.gmra.mrb[0].mxu0 %v828
  %v1453 = vpop.f32.mrb[0].mxu0
  %v1454 = vadd.f32 0.0, %v1453
  %v1455 = vpop.f32.mrb[0].mxu0
  %v1456 = vpop.f32.mrb[0].mxu0
  %v1457 = vadd.f32 0.0, %v1456
  %v1458 = vpop.f32.mrb[0].mxu0
  %1459 = vmatprep.mubr.bf16.mxu0 0
  %1460 = vmatmul.mubr.bf16.gmra.mrb[0].mxu0 %v829
  %v1461 = vpop.f32.mrb[0].mxu0
  %v1462 = vadd.f32 0.0, %v1461
  %v1463 = vpop.f32.mrb[0].mxu0
  %v1464 = vpop.f32.mrb[0].mxu0
  %v1465 = vadd.f32 0.0, %v1464
  %v1466 = vpop.f32.mrb[0].mxu0
  %1467 = vmatprep.mubr.bf16.mxu0 0
  %1468 = vmatmul.mubr.bf16.gmra.mrb[0].mxu0 %v830
  %v1469 = vpop.f32.mrb[0].mxu0
  %v1470 = vadd.f32 0.0, %v1469
  %v1471 = vpop.f32.mrb[0].mxu0
  %v1472 = vpop.f32.mrb[0].mxu0
  %v1473 = vadd.f32 0.0, %v1472
  %v1474 = vpop.f32.mrb[0].mxu0
  %1475 = vmatprep.mubr.bf16.mxu0 0
  %1476 = vmatmul.mubr.bf16.gmra.mrb[0].mxu0 %v831
  %v1477 = vpop.f32.mrb[0].mxu0
  %v1478 = vadd.f32 0.0, %v1477
  %v1479 = vpop.f32.mrb[0].mxu0
  %v1480 = vpop.f32.mrb[0].mxu0
  %v1481 = vadd.f32 0.0, %v1480
  %v1482 = vpop.f32.mrb[0].mxu0
  %1483 = vmatprep.mubr.bf16.mxu0 0
  %1484 = vmatmul.mubr.bf16.gmra.mrb[0].mxu0 %v832
  %v1485 = vpop.f32.mrb[0].mxu0
  %v1486 = vadd.f32 0.0, %v1485
  %v1487 = vpop.f32.mrb[0].mxu0
  %v1488 = vpop.f32.mrb[0].mxu0
  %v1489 = vadd.f32 0.0, %v1488
  %v1490 = vpop.f32.mrb[0].mxu0
  %1491 = vdwg.mxu0
  %v1492 = vadd.f32 %v1379, %v1430
  %v1493 = vadd.f32 %v1380, %v1433
  %v1494 = vadd.f32 %v1381, %v1438
  %v1495 = vadd.f32 %v1382, %v1441
  %v1496 = vadd.f32 %v1383, %v1446
  %v1497 = vadd.f32 %v1384, %v1449
  %v1498 = vadd.f32 %v1385, %v1454
  %v1499 = vadd.f32 %v1386, %v1457
  %v1500 = vadd.f32 %v1387, %v1462
  %v1501 = vadd.f32 %v1388, %v1465
  %v1502 = vadd.f32 %v1389, %v1470
  %v1503 = vadd.f32 %v1390, %v1473
  %v1504 = vadd.f32 %v1391, %v1478
  %v1505 = vadd.f32 %v1392, %v1481
  %v1506 = vadd.f32 %v1393, %v1486
  %v1507 = vadd.f32 %v1394, %v1489
  %1508 = vst [vmem:[#allocation4] sm:$0xff] %v1492
  %1509 = vst [vmem:[#allocation4 + $0x8] sm:$0xff] %v1493
  %1510 = vst [vmem:[#allocation4 + $0x10] sm:$0xff] %v1494
  %1511 = vst [vmem:[#allocation4 + $0x18] sm:$0xff] %v1495
  %1512 = vst [vmem:[#allocation4 + $0x20] sm:$0xff] %v1496
  %1513 = vst [vmem:[#allocation4 + $0x28] sm:$0xff] %v1497
  %1514 = vst [vmem:[#allocation4 + $0x30] sm:$0xff] %v1498
  %1515 = vst [vmem:[#allocation4 + $0x38] sm:$0xff] %v1499
  %1516 = vst [vmem:[#allocation4 + $0x40] sm:$0xff] %v1500
  %1517 = vst [vmem:[#allocation4 + $0x48] sm:$0xff] %v1501
  %1518 = vst [vmem:[#allocation4 + $0x50] sm:$0xff] %v1502
  %1519 = vst [vmem:[#allocation4 + $0x58] sm:$0xff] %v1503
  %1520 = vst [vmem:[#allocation4 + $0x60] sm:$0xff] %v1504
  %1521 = vst [vmem:[#allocation4 + $0x68] sm:$0xff] %v1505
  %1522 = vst [vmem:[#allocation4 + $0x70] sm:$0xff] %v1506
  %1523 = vst [vmem:[#allocation4 + $0x78] sm:$0xff] %v1507
  %v1524 = vld [vmem:[%s9] sm:$0x1]
  %v1525 = vld [vmem:[%s10] sm:$0x1]
  %v1526 = vmul.f32 %v1138, %v51
  %v1527 = vmul.f32 %v1139, %v51
  %v1528 = vmul.f32 %v1140, %v51
  %v1529 = vmul.f32 %v1141, %v51
  %v1530 = vmul.f32 %v1142, %v51
  %v1531 = vmul.f32 %v1143, %v51
  %v1532 = vmul.f32 %v1144, %v51
  %v1533 = vmul.f32 %v1145, %v51
  %v1534 = vmul.f32 %v1146, %v51
  %v1535 = vmul.f32 %v1147, %v51
  %v1536 = vmul.f32 %v1148, %v51
  %v1537 = vmul.f32 %v1149, %v51
  %v1538 = vmul.f32 %v1150, %v51
  %v1539 = vmul.f32 %v1151, %v51
  %v1540 = vmul.f32 %v1152, %v51
  %v1541 = vmul.f32 %v1153, %v51
  %1542 = vadd.xlane.f32.xlu0 %v1526
  %v1543 = vpop.xlane.xlu0 %1542
  %1544 = vadd.xlane.f32.xlu0 %v1527
  %v1545 = vpop.xlane.xlu0 %1544
  %1546 = vadd.xlane.f32.xlu0 %v1528
  %v1547 = vpop.xlane.xlu0 %1546
  %1548 = vadd.xlane.f32.xlu0 %v1529
  %v1549 = vpop.xlane.xlu0 %1548
  %1550 = vadd.xlane.f32.xlu0 %v1530
  %v1551 = vpop.xlane.xlu0 %1550
  %1552 = vadd.xlane.f32.xlu0 %v1531
  %v1553 = vpop.xlane.xlu0 %1552
  %1554 = vadd.xlane.f32.xlu0 %v1532
  %v1555 = vpop.xlane.xlu0 %1554
  %1556 = vadd.xlane.f32.xlu0 %v1533
  %v1557 = vpop.xlane.xlu0 %1556
  %1558 = vadd.xlane.f32.xlu0 %v1534
  %v1559 = vpop.xlane.xlu0 %1558
  %1560 = vadd.xlane.f32.xlu0 %v1535
  %v1561 = vpop.xlane.xlu0 %1560
  %1562 = vadd.xlane.f32.xlu0 %v1536
  %v1563 = vpop.xlane.xlu0 %1562
  %1564 = vadd.xlane.f32.xlu0 %v1537
  %v1565 = vpop.xlane.xlu0 %1564
  %1566 = vadd.xlane.f32.xlu0 %v1538
  %v1567 = vpop.xlane.xlu0 %1566
  %1568 = vadd.xlane.f32.xlu0 %v1539
  %v1569 = vpop.xlane.xlu0 %1568
  %1570 = vadd.xlane.f32.xlu0 %v1540
  %v1571 = vpop.xlane.xlu0 %1570
  %1572 = vadd.xlane.f32.xlu0 %v1541
  %v1573 = vpop.xlane.xlu0 %1572
  %v1574 = vmul.f32 %v1543, 0.03125
  %v1575 = vmul.f32 %v1545, 0.03125
  %v1576 = vmul.f32 %v1547, 0.03125
  %v1577 = vmul.f32 %v1549, 0.03125
  %v1578 = vmul.f32 %v1551, 0.03125
  %v1579 = vmul.f32 %v1553, 0.03125
  %v1580 = vmul.f32 %v1555, 0.03125
  %v1581 = vmul.f32 %v1557, 0.03125
  %v1582 = vmul.f32 %v1559, 0.03125
  %v1583 = vmul.f32 %v1561, 0.03125
  %v1584 = vmul.f32 %v1563, 0.03125
  %v1585 = vmul.f32 %v1565, 0.03125
  %v1586 = vmul.f32 %v1567, 0.03125
  %v1587 = vmul.f32 %v1569, 0.03125
  %v1588 = vmul.f32 %v1571, 0.03125
  %v1589 = vmul.f32 %v1573, 0.03125
  %v1590 = vsub.f32 %v1138, %v1574
  %v1591 = vsub.f32 %v1139, %v1575
  %v1592 = vsub.f32 %v1140, %v1576
  %v1593 = vsub.f32 %v1141, %v1577
  %v1594 = vsub.f32 %v1142, %v1578
  %v1595 = vsub.f32 %v1143, %v1579
  %v1596 = vsub.f32 %v1144, %v1580
  %v1597 = vsub.f32 %v1145, %v1581
  %v1598 = vsub.f32 %v1146, %v1582
  %v1599 = vsub.f32 %v1147, %v1583
  %v1600 = vsub.f32 %v1148, %v1584
  %v1601 = vsub.f32 %v1149, %v1585
  %v1602 = vsub.f32 %v1150, %v1586
  %v1603 = vsub.f32 %v1151, %v1587
  %v1604 = vsub.f32 %v1152, %v1588
  %v1605 = vsub.f32 %v1153, %v1589
  %v1606 = vmul.f32 %v1590, %v51
  %v1607 = vmul.f32 %v1591, %v51
  %v1608 = vmul.f32 %v1592, %v51
  %v1609 = vmul.f32 %v1593, %v51
  %v1610 = vmul.f32 %v1594, %v51
  %v1611 = vmul.f32 %v1595, %v51
  %v1612 = vmul.f32 %v1596, %v51
  %v1613 = vmul.f32 %v1597, %v51
  %v1614 = vmul.f32 %v1598, %v51
  %v1615 = vmul.f32 %v1599, %v51
  %v1616 = vmul.f32 %v1600, %v51
  %v1617 = vmul.f32 %v1601, %v51
  %v1618 = vmul.f32 %v1602, %v51
  %v1619 = vmul.f32 %v1603, %v51
  %v1620 = vmul.f32 %v1604, %v51
  %v1621 = vmul.f32 %v1605, %v51
  %v1622 = vmul.f32 %v1606, %v1606
  %v1623 = vmul.f32 %v1607, %v1607
  %v1624 = vmul.f32 %v1608, %v1608
  %v1625 = vmul.f32 %v1609, %v1609
  %v1626 = vmul.f32 %v1610, %v1610
  %v1627 = vmul.f32 %v1611, %v1611
  %v1628 = vmul.f32 %v1612, %v1612
  %v1629 = vmul.f32 %v1613, %v1613
  %v1630 = vmul.f32 %v1614, %v1614
  %v1631 = vmul.f32 %v1615, %v1615
  %v1632 = vmul.f32 %v1616, %v1616
  %v1633 = vmul.f32 %v1617, %v1617
  %v1634 = vmul.f32 %v1618, %v1618
  %v1635 = vmul.f32 %v1619, %v1619
  %v1636 = vmul.f32 %v1620, %v1620
  %v1637 = vmul.f32 %v1621, %v1621
  %1638 = vadd.xlane.f32.xlu0 %v1622
  %v1639 = vpop.xlane.xlu0 %1638
  %1640 = vadd.xlane.f32.xlu0 %v1623
  %v1641 = vpop.xlane.xlu0 %1640
  %1642 = vadd.xlane.f32.xlu0 %v1624
  %v1643 = vpop.xlane.xlu0 %1642
  %1644 = vadd.xlane.f32.xlu0 %v1625
  %v1645 = vpop.xlane.xlu0 %1644
  %1646 = vadd.xlane.f32.xlu0 %v1626
  %v1647 = vpop.xlane.xlu0 %1646
  %1648 = vadd.xlane.f32.xlu0 %v1627
  %v1649 = vpop.xlane.xlu0 %1648
  %1650 = vadd.xlane.f32.xlu0 %v1628
  %v1651 = vpop.xlane.xlu0 %1650
  %1652 = vadd.xlane.f32.xlu0 %v1629
  %v1653 = vpop.xlane.xlu0 %1652
  %1654 = vadd.xlane.f32.xlu0 %v1630
  %v1655 = vpop.xlane.xlu0 %1654
  %1656 = vadd.xlane.f32.xlu0 %v1631
  %v1657 = vpop.xlane.xlu0 %1656
  %1658 = vadd.xlane.f32.xlu0 %v1632
  %v1659 = vpop.xlane.xlu0 %1658
  %1660 = vadd.xlane.f32.xlu0 %v1633
  %v1661 = vpop.xlane.xlu0 %1660
  %1662 = vadd.xlane.f32.xlu0 %v1634
  %v1663 = vpop.xlane.xlu0 %1662
  %1664 = vadd.xlane.f32.xlu0 %v1635
  %v1665 = vpop.xlane.xlu0 %1664
  %1666 = vadd.xlane.f32.xlu0 %v1636
  %v1667 = vpop.xlane.xlu0 %1666
  %1668 = vadd.xlane.f32.xlu0 %v1637
  %v1669 = vpop.xlane.xlu0 %1668
  %v1670 = vmul.f32 %v1639, 0.03125
  %v1671 = vmul.f32 %v1641, 0.03125
  %v1672 = vmul.f32 %v1643, 0.03125
  %v1673 = vmul.f32 %v1645, 0.03125
  %v1674 = vmul.f32 %v1647, 0.03125
  %v1675 = vmul.f32 %v1649, 0.03125
  %v1676 = vmul.f32 %v1651, 0.03125
  %v1677 = vmul.f32 %v1653, 0.03125
  %v1678 = vmul.f32 %v1655, 0.03125
  %v1679 = vmul.f32 %v1657, 0.03125
  %v1680 = vmul.f32 %v1659, 0.03125
  %v1681 = vmul.f32 %v1661, 0.03125
  %v1682 = vmul.f32 %v1663, 0.03125
  %v1683 = vmul.f32 %v1665, 0.03125
  %v1684 = vmul.f32 %v1667, 0.03125
  %v1685 = vmul.f32 %v1669, 0.03125
  %v1686 = vadd.f32 %v1670, 1e-05
  %v1687 = vadd.f32 %v1671, 1e-05
  %v1688 = vadd.f32 %v1672, 1e-05
  %v1689 = vadd.f32 %v1673, 1e-05
  %v1690 = vadd.f32 %v1674, 1e-05
  %v1691 = vadd.f32 %v1675, 1e-05
  %v1692 = vadd.f32 %v1676, 1e-05
  %v1693 = vadd.f32 %v1677, 1e-05
  %v1694 = vadd.f32 %v1678, 1e-05
  %v1695 = vadd.f32 %v1679, 1e-05
  %v1696 = vadd.f32 %v1680, 1e-05
  %v1697 = vadd.f32 %v1681, 1e-05
  %v1698 = vadd.f32 %v1682, 1e-05
  %v1699 = vadd.f32 %v1683, 1e-05
  %v1700 = vadd.f32 %v1684, 1e-05
  %v1701 = vadd.f32 %v1685, 1e-05
  %v1702 = vrsqrt.pop %v1686
  %v1703 = vrsqrt.pop %v1687
  %v1704 = vrsqrt.pop %v1688
  %v1705 = vrsqrt.pop %v1689
  %v1706 = vrsqrt.pop %v1690
  %v1707 = vrsqrt.pop %v1691
  %v1708 = vrsqrt.pop %v1692
  %v1709 = vrsqrt.pop %v1693
  %v1710 = vrsqrt.pop %v1694
  %v1711 = vrsqrt.pop %v1695
  %v1712 = vrsqrt.pop %v1696
  %v1713 = vrsqrt.pop %v1697
  %v1714 = vrsqrt.pop %v1698
  %v1715 = vrsqrt.pop %v1699
  %v1716 = vrsqrt.pop %v1700
  %v1717 = vrsqrt.pop %v1701
  %v1718 = vmul.f32 %v1606, %v1702
  %v1719 = vmul.f32 %v1607, %v1703
  %v1720 = vmul.f32 %v1608, %v1704
  %v1721 = vmul.f32 %v1609, %v1705
  %v1722 = vmul.f32 %v1610, %v1706
  %v1723 = vmul.f32 %v1611, %v1707
  %v1724 = vmul.f32 %v1612, %v1708
  %v1725 = vmul.f32 %v1613, %v1709
  %v1726 = vmul.f32 %v1614, %v1710
  %v1727 = vmul.f32 %v1615, %v1711
  %v1728 = vmul.f32 %v1616, %v1712
  %v1729 = vmul.f32 %v1617, %v1713
  %v1730 = vmul.f32 %v1618, %v1714
  %v1731 = vmul.f32 %v1619, %v1715
  %v1732 = vmul.f32 %v1620, %v1716
  %v1733 = vmul.f32 %v1621, %v1717
  %v1735 = vlaneseq
  %v1736 = vshrl.u32 %v1735, 7
  %v1737 = vsub.s32 0, %v1736
  %v1738 = vrot.slane %v1524, %v1737
  %v1740 = vmul.f32 %v1718, %v1738
  %v1741 = vmul.f32 %v1719, %v1738
  %v1742 = vmul.f32 %v1720, %v1738
  %v1743 = vmul.f32 %v1721, %v1738
  %v1744 = vmul.f32 %v1722, %v1738
  %v1745 = vmul.f32 %v1723, %v1738
  %v1746 = vmul.f32 %v1724, %v1738
  %v1747 = vmul.f32 %v1725, %v1738
  %v1748 = vmul.f32 %v1726, %v1738
  %v1749 = vmul.f32 %v1727, %v1738
  %v1750 = vmul.f32 %v1728, %v1738
  %v1751 = vmul.f32 %v1729, %v1738
  %v1752 = vmul.f32 %v1730, %v1738
  %v1753 = vmul.f32 %v1731, %v1738
  %v1754 = vmul.f32 %v1732, %v1738
  %v1755 = vmul.f32 %v1733, %v1738
  %v1757 = vlaneseq
  %v1758 = vshrl.u32 %v1757, 7
  %v1759 = vsub.s32 0, %v1758
  %v1760 = vrot.slane %v1525, %v1759
  %v1762 = vadd.f32 %v1740, %v1760
  %v1763 = vadd.f32 %v1741, %v1760
  %v1764 = vadd.f32 %v1742, %v1760
  %v1765 = vadd.f32 %v1743, %v1760
  %v1766 = vadd.f32 %v1744, %v1760
  %v1767 = vadd.f32 %v1745, %v1760
  %v1768 = vadd.f32 %v1746, %v1760
  %v1769 = vadd.f32 %v1747, %v1760
  %v1770 = vadd.f32 %v1748, %v1760
  %v1771 = vadd.f32 %v1749, %v1760
  %v1772 = vadd.f32 %v1750, %v1760
  %v1773 = vadd.f32 %v1751, %v1760
  %v1774 = vadd.f32 %v1752, %v1760
  %v1775 = vadd.f32 %v1753, %v1760
  %v1776 = vadd.f32 %v1754, %v1760
  %v1777 = vadd.f32 %v1755, %v1760
  %v1778 = vmax.f32 %v1762, 0.0
  %v1779 = vmax.f32 %v1763, 0.0
  %v1780 = vmax.f32 %v1764, 0.0
  %v1781 = vmax.f32 %v1765, 0.0
  %v1782 = vmax.f32 %v1766, 0.0
  %v1783 = vmax.f32 %v1767, 0.0
  %v1784 = vmax.f32 %v1768, 0.0
  %v1785 = vmax.f32 %v1769, 0.0
  %v1786 = vmax.f32 %v1770, 0.0
  %v1787 = vmax.f32 %v1771, 0.0
  %v1788 = vmax.f32 %v1772, 0.0
  %v1789 = vmax.f32 %v1773, 0.0
  %v1790 = vmax.f32 %v1774, 0.0
  %v1791 = vmax.f32 %v1775, 0.0
  %v1792 = vmax.f32 %v1776, 0.0
  %v1793 = vmax.f32 %v1777, 0.0
  %v1794 = vadd.f32 %v833, %v1778
  %v1795 = vadd.f32 %v834, %v1779
  %v1796 = vadd.f32 %v835, %v1780
  %v1797 = vadd.f32 %v836, %v1781
  %v1798 = vadd.f32 %v837, %v1782
  %v1799 = vadd.f32 %v838, %v1783
  %v1800 = vadd.f32 %v839, %v1784
  %v1801 = vadd.f32 %v840, %v1785
  %v1802 = vadd.f32 %v841, %v1786
  %v1803 = vadd.f32 %v842, %v1787
  %v1804 = vadd.f32 %v843, %v1788
  %v1805 = vadd.f32 %v844, %v1789
  %v1806 = vadd.f32 %v845, %v1790
  %v1807 = vadd.f32 %v846, %v1791
  %v1808 = vadd.f32 %v847, %v1792
  %v1809 = vadd.f32 %v848, %v1793
  %1810 = vst [vmem:[%s13] sm:$0xff] %v1794
  %1811 = vst [vmem:[%s13 + $0x8] sm:$0xff] %v1795
  %1812 = vst [vmem:[%s13 + $0x10] sm:$0xff] %v1796
  %1813 = vst [vmem:[%s13 + $0x18] sm:$0xff] %v1797
  %1814 = vst [vmem:[%s13 + $0x20] sm:$0xff] %v1798
  %1815 = vst [vmem:[%s13 + $0x28] sm:$0xff] %v1799
  %1816 = vst [vmem:[%s13 + $0x30] sm:$0xff] %v1800
  %1817 = vst [vmem:[%s13 + $0x38] sm:$0xff] %v1801
  %1818 = vst [vmem:[%s13 + $0x40] sm:$0xff] %v1802
  %1819 = vst [vmem:[%s13 + $0x48] sm:$0xff] %v1803
  %1820 = vst [vmem:[%s13 + $0x50] sm:$0xff] %v1804
  %1821 = vst [vmem:[%s13 + $0x58] sm:$0xff] %v1805
  %1822 = vst [vmem:[%s13 + $0x60] sm:$0xff] %v1806
  %1823 = vst [vmem:[%s13 + $0x68] sm:$0xff] %v1807
  %1824 = vst [vmem:[%s13 + $0x70] sm:$0xff] %v1808
  %1825 = vst [vmem:[%s13 + $0x78] sm:$0xff] %v1809
  // Predicated region
  $region58: #{residual_gated_gcn_layer.1} parent=0 // pred_check
    %p1826 = pneg %p52
  $region59: #{residual_gated_gcn_layer.1} parent=0 // pred_check_branch
    %1828 = sbr.rel (%p1826) target = $region61
  $region60: #{residual_gated_gcn_layer.1} parent=0 // pred_region
    %v1829 = vld [vmem:[%s1] sm:$0xff]
    %v1830 = vld [vmem:[%s1 + $0x8] sm:$0xff]
    %v1831 = vld [vmem:[%s1 + $0x10] sm:$0xff]
    %v1832 = vld [vmem:[%s1 + $0x18] sm:$0xff]
    %v1833 = vld [vmem:[%s1 + $0x20] sm:$0xff]
    %v1834 = vld [vmem:[%s1 + $0x28] sm:$0xff]
    %v1835 = vld [vmem:[%s1 + $0x30] sm:$0xff]
    %v1836 = vld [vmem:[%s1 + $0x38] sm:$0xff]
    %v1837 = vld [vmem:[%s1 + $0x40] sm:$0xff]
    %v1838 = vld [vmem:[%s1 + $0x48] sm:$0xff]
    %v1839 = vld [vmem:[%s1 + $0x50] sm:$0xff]
    %v1840 = vld [vmem:[%s1 + $0x58] sm:$0xff]
    %v1841 = vld [vmem:[%s1 + $0x60] sm:$0xff]
    %v1842 = vld [vmem:[%s1 + $0x68] sm:$0xff]
    %v1843 = vld [vmem:[%s1 + $0x70] sm:$0xff]
    %v1844 = vld [vmem:[%s1 + $0x78] sm:$0xff]
    %v1845 = vld [vmem:[#allocation4] sm:$0xff]
    %v1846 = vld [vmem:[#allocation4 + $0x8] sm:$0xff]
    %v1847 = vld [vmem:[#allocation4 + $0x10] sm:$0xff]
    %v1848 = vld [vmem:[#allocation4 + $0x18] sm:$0xff]
    %v1849 = vld [vmem:[#allocation4 + $0x20] sm:$0xff]
    %v1850 = vld [vmem:[#allocation4 + $0x28] sm:$0xff]
    %v1851 = vld [vmem:[#allocation4 + $0x30] sm:$0xff]
    %v1852 = vld [vmem:[#allocation4 + $0x38] sm:$0xff]
    %v1853 = vld [vmem:[#allocation4 + $0x40] sm:$0xff]
    %v1854 = vld [vmem:[#allocation4 + $0x48] sm:$0xff]
    %v1855 = vld [vmem:[#allocation4 + $0x50] sm:$0xff]
    %v1856 = vld [vmem:[#allocation4 + $0x58] sm:$0xff]
    %v1857 = vld [vmem:[#allocation4 + $0x60] sm:$0xff]
    %v1858 = vld [vmem:[#allocation4 + $0x68] sm:$0xff]
    %v1859 = vld [vmem:[#allocation4 + $0x70] sm:$0xff]
    %v1860 = vld [vmem:[#allocation4 + $0x78] sm:$0xff]
    %v1861 = vld [vmem:[%s11] sm:$0x1]
    %v1862 = vld [vmem:[%s12] sm:$0x1]
    %v1863 = vmul.f32 %v1845, %v51
    %v1864 = vmul.f32 %v1846, %v51
    %v1865 = vmul.f32 %v1847, %v51
    %v1866 = vmul.f32 %v1848, %v51
    %v1867 = vmul.f32 %v1849, %v51
    %v1868 = vmul.f32 %v1850, %v51
    %v1869 = vmul.f32 %v1851, %v51
    %v1870 = vmul.f32 %v1852, %v51
    %v1871 = vmul.f32 %v1853, %v51
    %v1872 = vmul.f32 %v1854, %v51
    %v1873 = vmul.f32 %v1855, %v51
    %v1874 = vmul.f32 %v1856, %v51
    %v1875 = vmul.f32 %v1857, %v51
    %v1876 = vmul.f32 %v1858, %v51
    %v1877 = vmul.f32 %v1859, %v51
    %v1878 = vmul.f32 %v1860, %v51
    %1879 = vadd.xlane.f32.xlu0 %v1863
    %v1880 = vpop.xlane.xlu0 %1879
    %1881 = vadd.xlane.f32.xlu0 %v1864
    %v1882 = vpop.xlane.xlu0 %1881
    %1883 = vadd.xlane.f32.xlu0 %v1865
    %v1884 = vpop.xlane.xlu0 %1883
    %1885 = vadd.xlane.f32.xlu0 %v1866
    %v1886 = vpop.xlane.xlu0 %1885
    %1887 = vadd.xlane.f32.xlu0 %v1867
    %v1888 = vpop.xlane.xlu0 %1887
    %1889 = vadd.xlane.f32.xlu0 %v1868
    %v1890 = vpop.xlane.xlu0 %1889
    %1891 = vadd.xlane.f32.xlu0 %v1869
    %v1892 = vpop.xlane.xlu0 %1891
    %1893 = vadd.xlane.f32.xlu0 %v1870
    %v1894 = vpop.xlane.xlu0 %1893
    %1895 = vadd.xlane.f32.xlu0 %v1871
    %v1896 = vpop.xlane.xlu0 %1895
    %1897 = vadd.xlane.f32.xlu0 %v1872
    %v1898 = vpop.xlane.xlu0 %1897
    %1899 = vadd.xlane.f32.xlu0 %v1873
    %v1900 = vpop.xlane.xlu0 %1899
    %1901 = vadd.xlane.f32.xlu0 %v1874
    %v1902 = vpop.xlane.xlu0 %1901
    %1903 = vadd.xlane.f32.xlu0 %v1875
    %v1904 = vpop.xlane.xlu0 %1903
    %1905 = vadd.xlane.f32.xlu0 %v1876
    %v1906 = vpop.xlane.xlu0 %1905
    %1907 = vadd.xlane.f32.xlu0 %v1877
    %v1908 = vpop.xlane.xlu0 %1907
    %1909 = vadd.xlane.f32.xlu0 %v1878
    %v1910 = vpop.xlane.xlu0 %1909
    %v1911 = vmul.f32 %v1880, 0.03125
    %v1912 = vmul.f32 %v1882, 0.03125
    %v1913 = vmul.f32 %v1884, 0.03125
    %v1914 = vmul.f32 %v1886, 0.03125
    %v1915 = vmul.f32 %v1888, 0.03125
    %v1916 = vmul.f32 %v1890, 0.03125
    %v1917 = vmul.f32 %v1892, 0.03125
    %v1918 = vmul.f32 %v1894, 0.03125
    %v1919 = vmul.f32 %v1896, 0.03125
    %v1920 = vmul.f32 %v1898, 0.03125
    %v1921 = vmul.f32 %v1900, 0.03125
    %v1922 = vmul.f32 %v1902, 0.03125
    %v1923 = vmul.f32 %v1904, 0.03125
    %v1924 = vmul.f32 %v1906, 0.03125
    %v1925 = vmul.f32 %v1908, 0.03125
    %v1926 = vmul.f32 %v1910, 0.03125
    %v1927 = vsub.f32 %v1845, %v1911
    %v1928 = vsub.f32 %v1846, %v1912
    %v1929 = vsub.f32 %v1847, %v1913
    %v1930 = vsub.f32 %v1848, %v1914
    %v1931 = vsub.f32 %v1849, %v1915
    %v1932 = vsub.f32 %v1850, %v1916
    %v1933 = vsub.f32 %v1851, %v1917
    %v1934 = vsub.f32 %v1852, %v1918
    %v1935 = vsub.f32 %v1853, %v1919
    %v1936 = vsub.f32 %v1854, %v1920
    %v1937 = vsub.f32 %v1855, %v1921
    %v1938 = vsub.f32 %v1856, %v1922
    %v1939 = vsub.f32 %v1857, %v1923
    %v1940 = vsub.f32 %v1858, %v1924
    %v1941 = vsub.f32 %v1859, %v1925
    %v1942 = vsub.f32 %v1860, %v1926
    %v1943 = vmul.f32 %v1927, %v51
    %v1944 = vmul.f32 %v1928, %v51
    %v1945 = vmul.f32 %v1929, %v51
    %v1946 = vmul.f32 %v1930, %v51
    %v1947 = vmul.f32 %v1931, %v51
    %v1948 = vmul.f32 %v1932, %v51
    %v1949 = vmul.f32 %v1933, %v51
    %v1950 = vmul.f32 %v1934, %v51
    %v1951 = vmul.f32 %v1935, %v51
    %v1952 = vmul.f32 %v1936, %v51
    %v1953 = vmul.f32 %v1937, %v51
    %v1954 = vmul.f32 %v1938, %v51
    %v1955 = vmul.f32 %v1939, %v51
    %v1956 = vmul.f32 %v1940, %v51
    %v1957 = vmul.f32 %v1941, %v51
    %v1958 = vmul.f32 %v1942, %v51
    %v1959 = vmul.f32 %v1943, %v1943
    %v1960 = vmul.f32 %v1944, %v1944
    %v1961 = vmul.f32 %v1945, %v1945
    %v1962 = vmul.f32 %v1946, %v1946
    %v1963 = vmul.f32 %v1947, %v1947
    %v1964 = vmul.f32 %v1948, %v1948
    %v1965 = vmul.f32 %v1949, %v1949
    %v1966 = vmul.f32 %v1950, %v1950
    %v1967 = vmul.f32 %v1951, %v1951
    %v1968 = vmul.f32 %v1952, %v1952
    %v1969 = vmul.f32 %v1953, %v1953
    %v1970 = vmul.f32 %v1954, %v1954
    %v1971 = vmul.f32 %v1955, %v1955
    %v1972 = vmul.f32 %v1956, %v1956
    %v1973 = vmul.f32 %v1957, %v1957
    %v1974 = vmul.f32 %v1958, %v1958
    %1975 = vadd.xlane.f32.xlu0 %v1959
    %v1976 = vpop.xlane.xlu0 %1975
    %1977 = vadd.xlane.f32.xlu0 %v1960
    %v1978 = vpop.xlane.xlu0 %1977
    %1979 = vadd.xlane.f32.xlu0 %v1961
    %v1980 = vpop.xlane.xlu0 %1979
    %1981 = vadd.xlane.f32.xlu0 %v1962
    %v1982 = vpop.xlane.xlu0 %1981
    %1983 = vadd.xlane.f32.xlu0 %v1963
    %v1984 = vpop.xlane.xlu0 %1983
    %1985 = vadd.xlane.f32.xlu0 %v1964
    %v1986 = vpop.xlane.xlu0 %1985
    %1987 = vadd.xlane.f32.xlu0 %v1965
    %v1988 = vpop.xlane.xlu0 %1987
    %1989 = vadd.xlane.f32.xlu0 %v1966
    %v1990 = vpop.xlane.xlu0 %1989
    %1991 = vadd.xlane.f32.xlu0 %v1967
    %v1992 = vpop.xlane.xlu0 %1991
    %1993 = vadd.xlane.f32.xlu0 %v1968
    %v1994 = vpop.xlane.xlu0 %1993
    %1995 = vadd.xlane.f32.xlu0 %v1969
    %v1996 = vpop.xlane.xlu0 %1995
    %1997 = vadd.xlane.f32.xlu0 %v1970
    %v1998 = vpop.xlane.xlu0 %1997
    %1999 = vadd.xlane.f32.xlu0 %v1971
    %v2000 = vpop.xlane.xlu0 %1999
    %2001 = vadd.xlane.f32.xlu0 %v1972
    %v2002 = vpop.xlane.xlu0 %2001
    %2003 = vadd.xlane.f32.xlu0 %v1973
    %v2004 = vpop.xlane.xlu0 %2003
    %2005 = vadd.xlane.f32.xlu0 %v1974
    %v2006 = vpop.xlane.xlu0 %2005
    %v2007 = vmul.f32 %v1976, 0.03125
    %v2008 = vmul.f32 %v1978, 0.03125
    %v2009 = vmul.f32 %v1980, 0.03125
    %v2010 = vmul.f32 %v1982, 0.03125
    %v2011 = vmul.f32 %v1984, 0.03125
    %v2012 = vmul.f32 %v1986, 0.03125
    %v2013 = vmul.f32 %v1988, 0.03125
    %v2014 = vmul.f32 %v1990, 0.03125
    %v2015 = vmul.f32 %v1992, 0.03125
    %v2016 = vmul.f32 %v1994, 0.03125
    %v2017 = vmul.f32 %v1996, 0.03125
    %v2018 = vmul.f32 %v1998, 0.03125
    %v2019 = vmul.f32 %v2000, 0.03125
    %v2020 = vmul.f32 %v2002, 0.03125
    %v2021 = vmul.f32 %v2004, 0.03125
    %v2022 = vmul.f32 %v2006, 0.03125
    %v2023 = vadd.f32 %v2007, 1e-05
    %v2024 = vadd.f32 %v2008, 1e-05
    %v2025 = vadd.f32 %v2009, 1e-05
    %v2026 = vadd.f32 %v2010, 1e-05
    %v2027 = vadd.f32 %v2011, 1e-05
    %v2028 = vadd.f32 %v2012, 1e-05
    %v2029 = vadd.f32 %v2013, 1e-05
    %v2030 = vadd.f32 %v2014, 1e-05
    %v2031 = vadd.f32 %v2015, 1e-05
    %v2032 = vadd.f32 %v2016, 1e-05
    %v2033 = vadd.f32 %v2017, 1e-05
    %v2034 = vadd.f32 %v2018, 1e-05
    %v2035 = vadd.f32 %v2019, 1e-05
    %v2036 = vadd.f32 %v2020, 1e-05
    %v2037 = vadd.f32 %v2021, 1e-05
    %v2038 = vadd.f32 %v2022, 1e-05
    %v2039 = vrsqrt.pop %v2023
    %v2040 = vrsqrt.pop %v2024
    %v2041 = vrsqrt.pop %v2025
    %v2042 = vrsqrt.pop %v2026
    %v2043 = vrsqrt.pop %v2027
    %v2044 = vrsqrt.pop %v2028
    %v2045 = vrsqrt.pop %v2029
    %v2046 = vrsqrt.pop %v2030
    %v2047 = vrsqrt.pop %v2031
    %v2048 = vrsqrt.pop %v2032
    %v2049 = vrsqrt.pop %v2033
    %v2050 = vrsqrt.pop %v2034
    %v2051 = vrsqrt.pop %v2035
    %v2052 = vrsqrt.pop %v2036
    %v2053 = vrsqrt.pop %v2037
    %v2054 = vrsqrt.pop %v2038
    %v2055 = vmul.f32 %v1943, %v2039
    %v2056 = vmul.f32 %v1944, %v2040
    %v2057 = vmul.f32 %v1945, %v2041
    %v2058 = vmul.f32 %v1946, %v2042
    %v2059 = vmul.f32 %v1947, %v2043
    %v2060 = vmul.f32 %v1948, %v2044
    %v2061 = vmul.f32 %v1949, %v2045
    %v2062 = vmul.f32 %v1950, %v2046
    %v2063 = vmul.f32 %v1951, %v2047
    %v2064 = vmul.f32 %v1952, %v2048
    %v2065 = vmul.f32 %v1953, %v2049
    %v2066 = vmul.f32 %v1954, %v2050
    %v2067 = vmul.f32 %v1955, %v2051
    %v2068 = vmul.f32 %v1956, %v2052
    %v2069 = vmul.f32 %v1957, %v2053
    %v2070 = vmul.f32 %v1958, %v2054
    %v2072 = vlaneseq
    %v2073 = vshrl.u32 %v2072, 7
    %v2074 = vsub.s32 0, %v2073
    %v2075 = vrot.slane %v1861, %v2074
    %v2077 = vmul.f32 %v2055, %v2075
    %v2078 = vmul.f32 %v2056, %v2075
    %v2079 = vmul.f32 %v2057, %v2075
    %v2080 = vmul.f32 %v2058, %v2075
    %v2081 = vmul.f32 %v2059, %v2075
    %v2082 = vmul.f32 %v2060, %v2075
    %v2083 = vmul.f32 %v2061, %v2075
    %v2084 = vmul.f32 %v2062, %v2075
    %v2085 = vmul.f32 %v2063, %v2075
    %v2086 = vmul.f32 %v2064, %v2075
    %v2087 = vmul.f32 %v2065, %v2075
    %v2088 = vmul.f32 %v2066, %v2075
    %v2089 = vmul.f32 %v2067, %v2075
    %v2090 = vmul.f32 %v2068, %v2075
    %v2091 = vmul.f32 %v2069, %v2075
    %v2092 = vmul.f32 %v2070, %v2075
    %v2094 = vlaneseq
    %v2095 = vshrl.u32 %v2094, 7
    %v2096 = vsub.s32 0, %v2095
    %v2097 = vrot.slane %v1862, %v2096
    %v2099 = vadd.f32 %v2077, %v2097
    %v2100 = vadd.f32 %v2078, %v2097
    %v2101 = vadd.f32 %v2079, %v2097
    %v2102 = vadd.f32 %v2080, %v2097
    %v2103 = vadd.f32 %v2081, %v2097
    %v2104 = vadd.f32 %v2082, %v2097
    %v2105 = vadd.f32 %v2083, %v2097
    %v2106 = vadd.f32 %v2084, %v2097
    %v2107 = vadd.f32 %v2085, %v2097
    %v2108 = vadd.f32 %v2086, %v2097
    %v2109 = vadd.f32 %v2087, %v2097
    %v2110 = vadd.f32 %v2088, %v2097
    %v2111 = vadd.f32 %v2089, %v2097
    %v2112 = vadd.f32 %v2090, %v2097
    %v2113 = vadd.f32 %v2091, %v2097
    %v2114 = vadd.f32 %v2092, %v2097
    %v2115 = vmax.f32 %v2099, 0.0
    %v2116 = vmax.f32 %v2100, 0.0
    %v2117 = vmax.f32 %v2101, 0.0
    %v2118 = vmax.f32 %v2102, 0.0
    %v2119 = vmax.f32 %v2103, 0.0
    %v2120 = vmax.f32 %v2104, 0.0
    %v2121 = vmax.f32 %v2105, 0.0
    %v2122 = vmax.f32 %v2106, 0.0
    %v2123 = vmax.f32 %v2107, 0.0
    %v2124 = vmax.f32 %v2108, 0.0
    %v2125 = vmax.f32 %v2109, 0.0
    %v2126 = vmax.f32 %v2110, 0.0
    %v2127 = vmax.f32 %v2111, 0.0
    %v2128 = vmax.f32 %v2112, 0.0
    %v2129 = vmax.f32 %v2113, 0.0
    %v2130 = vmax.f32 %v2114, 0.0
    %v2131 = vadd.f32 %v1829, %v2115
    %v2132 = vadd.f32 %v1830, %v2116
    %v2133 = vadd.f32 %v1831, %v2117
    %v2134 = vadd.f32 %v1832, %v2118
    %v2135 = vadd.f32 %v1833, %v2119
    %v2136 = vadd.f32 %v1834, %v2120
    %v2137 = vadd.f32 %v1835, %v2121
    %v2138 = vadd.f32 %v1836, %v2122
    %v2139 = vadd.f32 %v1837, %v2123
    %v2140 = vadd.f32 %v1838, %v2124
    %v2141 = vadd.f32 %v1839, %v2125
    %v2142 = vadd.f32 %v1840, %v2126
    %v2143 = vadd.f32 %v1841, %v2127
    %v2144 = vadd.f32 %v1842, %v2128
    %v2145 = vadd.f32 %v1843, %v2129
    %v2146 = vadd.f32 %v1844, %v2130
    %2147 = vst [vmem:[%s14] sm:$0xff] %v2131
    %2148 = vst [vmem:[%s14 + $0x8] sm:$0xff] %v2132
    %2149 = vst [vmem:[%s14 + $0x10] sm:$0xff] %v2133
    %2150 = vst [vmem:[%s14 + $0x18] sm:$0xff] %v2134
    %2151 = vst [vmem:[%s14 + $0x20] sm:$0xff] %v2135
    %2152 = vst [vmem:[%s14 + $0x28] sm:$0xff] %v2136
    %2153 = vst [vmem:[%s14 + $0x30] sm:$0xff] %v2137
    %2154 = vst [vmem:[%s14 + $0x38] sm:$0xff] %v2138
    %2155 = vst [vmem:[%s14 + $0x40] sm:$0xff] %v2139
    %2156 = vst [vmem:[%s14 + $0x48] sm:$0xff] %v2140
    %2157 = vst [vmem:[%s14 + $0x50] sm:$0xff] %v2141
    %2158 = vst [vmem:[%s14 + $0x58] sm:$0xff] %v2142
    %2159 = vst [vmem:[%s14 + $0x60] sm:$0xff] %v2143
    %2160 = vst [vmem:[%s14 + $0x68] sm:$0xff] %v2144
    %2161 = vst [vmem:[%s14 + $0x70] sm:$0xff] %v2145
    %2162 = vst [vmem:[%s14 + $0x78] sm:$0xff] %v2146
  $region61: #{residual_gated_gcn_layer.1} parent=0 // pred_fallthru
    _
  // Predicated region
  $region62: #{residual_gated_gcn_layer.1} parent=0 // pred_check
    _
  $region63: #{residual_gated_gcn_layer.1} parent=0 // pred_check_branch
    %2164 = sbr.rel (0) target = $region65
  $region64: #{residual_gated_gcn_layer.1} parent=0 // pred_region
    _
  $region65: #{residual_gated_gcn_layer.1} parent=0 // pred_fallthru
    _
  // Predicated region
  $region66: #{residual_gated_gcn_layer.1} parent=0 // pred_check
    _
  $region67: #{residual_gated_gcn_layer.1} parent=0 // pred_check_branch
    %2166 = sbr.rel (0) target = $region69
  $region68: #{residual_gated_gcn_layer.1} parent=0 // pred_region
    _
  $region69: #{residual_gated_gcn_layer.1} parent=0 // pred_fallthru
    _
  // Predicated region
  $region70: #{residual_gated_gcn_layer.1} parent=0 // pred_check
    _
  $region71: #{residual_gated_gcn_layer.1} parent=0 // pred_check_branch
    %2168 = sbr.rel (0) target = $region73
  $region72: #{residual_gated_gcn_layer.1} parent=0 // pred_region
    _
  $region73: #{residual_gated_gcn_layer.1} parent=0 // pred_fallthru
    _
  // Predicated region
  $region74: #{residual_gated_gcn_layer.1} parent=0 // pred_check
    _
  $region75: #{residual_gated_gcn_layer.1} parent=0 // pred_check_branch
    %2170 = sbr.rel (0) target = $region77
  $region76: #{residual_gated_gcn_layer.1} parent=0 // pred_region
    _
  $region77: #{residual_gated_gcn_layer.1} parent=0 // pred_fallthru
    _

</llo_original>
